<compile_context>
chip_gen: v7x
topology: tpu7x:2x2x1
jax: 0.10.0
libtpu: 0.0.40
codegen_flags: <defaults>
</compile_context>

<pallas_src>
import math

import jax
import jax.numpy as jnp
from jax.experimental import pallas as pl
from jax.experimental.pallas import tpu as pltpu

# ---------------- problem sizes (consistent with the module) -----------------
B = 2          # batch
Q_LEN = 8      # target (decoder) sequence length
K_LEN = 16     # memory (encoder) sequence length
D_MODEL = 32
N_HEAD = 4
D_K = D_MODEL // N_HEAD
D_FF = 64
LN_EPS = 1e-5
NEG_INF = -1e9  # matches masked_fill_(-1000000000.0)

BQ = B * Q_LEN  # 16 stacked decoder rows
BK = B * K_LEN  # 32 stacked memory rows
HQ = N_HEAD * Q_LEN
HD = N_HEAD * D_MODEL


# ---------------- in-kernel building blocks ----------------------------------
def _layernorm(x, g, b):
    mu = jnp.mean(x, axis=-1, keepdims=True)
    d = x - mu
    var = jnp.mean(d * d, axis=-1, keepdims=True)
    return d * jax.lax.rsqrt(var + LN_EPS) * g + b


def _attn(a_rows, kv_t, vo_rows, bias_hq):
    """Multi-head attention for ONE batch element with folded weights.

    a_rows : (Q, H*D)   rows of x_q @ wqk_flat   (lane block h = x_q @ (Wq_h Wk_h^T)/sqrt(dk))
    kv_t   : (D, K)     transposed key/value source rows
    vo_rows: (K, H*D)   rows of x_kv @ wvo_flat  (lane block h = x_kv @ (Wv_h Wo_h))
    bias_hq: (H*Q, K)   additive mask bias (0 / -1e9), head-tiled wrapper-side
    returns (Q, D)
    """
    # Heads stacked along sublanes: 4 static 32-lane slices + concat.
    a_stack = jnp.concatenate(
        [a_rows[:, h * D_MODEL:(h + 1) * D_MODEL] for h in range(N_HEAD)], axis=0)  # (H*Q, D)

    # Scores for all heads in one 2-D matmul; one stacked softmax.
    s = jnp.dot(a_stack, kv_t, preferred_element_type=jnp.float32) + bias_hq        # (H*Q, K)
    s = s - jnp.max(s, axis=-1, keepdims=True)
    p = jnp.exp(s)
    p = p * pl.reciprocal(jnp.sum(p, axis=-1, keepdims=True), approx=False)

    # P @ (V·Wo) for all heads in one matmul; keep the diagonal head blocks and sum.
    ctx = jnp.dot(p, vo_rows, preferred_element_type=jnp.float32)                   # (H*Q, H*D)
    out = ctx[0:Q_LEN, 0:D_MODEL]
    for h in range(1, N_HEAD):
        out = out + ctx[h * Q_LEN:(h + 1) * Q_LEN, h * D_MODEL:(h + 1) * D_MODEL]
    return out                                                                      # (Q, D)


# ---------------- fused decoder-layer kernel ----------------------------------
def decoder_layer_kernel(x_ref, mem_ref, sab_ref, cab_ref,
                         attnw_ref, ffnw_ref, vecp_ref, out_ref):
    x = x_ref[...]          # (B*Q, D)  batch-stacked decoder input
    mem = mem_ref[...]      # (B*K, D)  batch-stacked encoder memory

    vp = vecp_ref[...]      # (8, 64) packed gains / biases
    g1, b1 = vp[0:1, :D_MODEL], vp[1:2, :D_MODEL]
    g2, b2 = vp[2:3, :D_MODEL], vp[3:4, :D_MODEL]
    g3, b3 = vp[4:5, :D_MODEL], vp[5:6, :D_MODEL]
    bf1 = vp[6:7, :]                       # (1, D_FF)
    bf2 = vp[7:8, :D_MODEL]                # (1, D)

    wqk1, wvo1 = attnw_ref[0], attnw_ref[1]   # (D, H*D) each
    wqk2, wvo2 = attnw_ref[2], attnw_ref[3]
    wf1 = ffnw_ref[0][:D_MODEL, :]            # (D, D_FF)
    wf2 = ffnw_ref[1][:, :D_MODEL]            # (D_FF, D)

    # ---- 1) masked self-attention + residual + LayerNorm ----
    a1 = jnp.dot(x, wqk1, preferred_element_type=jnp.float32)     # (B*Q, H*D) lane-dense
    vo1 = jnp.dot(x, wvo1, preferred_element_type=jnp.float32)    # (B*Q, H*D)
    xt = x.T                                                      # (D, B*Q) single transpose
    sa_parts = []
    for b in range(B):                                            # static, B = 2
        q0 = b * Q_LEN
        sa_parts.append(_attn(a1[q0:q0 + Q_LEN, :],
                              xt[:, q0:q0 + Q_LEN],
                              vo1[q0:q0 + Q_LEN, :],
                              sab_ref[b]))
    sa = jnp.concatenate(sa_parts, axis=0)                        # (B*Q, D)
    y1 = _layernorm(x + sa, g1, b1)

    # ---- 2) encoder-decoder attention + residual + LayerNorm ----
    a2 = jnp.dot(y1, wqk2, preferred_element_type=jnp.float32)    # (B*Q, H*D)
    vo2 = jnp.dot(mem, wvo2, preferred_element_type=jnp.float32)  # (B*K, H*D)
    memt = mem.T                                                  # (D, B*K) single transpose
    ca_parts = []
    for b in range(B):
        q0 = b * Q_LEN
        k0 = b * K_LEN
        ca_parts.append(_attn(a2[q0:q0 + Q_LEN, :],
                              memt[:, k0:k0 + K_LEN],
                              vo2[k0:k0 + K_LEN, :],
                              cab_ref[b]))
    ca = jnp.concatenate(ca_parts, axis=0)                        # (B*Q, D)
    y2 = _layernorm(y1 + ca, g2, b2)

    # ---- 3) feed-forward + residual + LayerNorm (batch-stacked) ----
    h = jnp.maximum(jnp.dot(y2, wf1, preferred_element_type=jnp.float32) + bf1, 0.0)
    f = jnp.dot(h, wf2, preferred_element_type=jnp.float32) + bf2
    out_ref[...] = _layernorm(y2 + f, g3, b3)


# ---------------- one-time parameter / mask preparation (out of hot path) -----
def prepare_decoder_layer(params, tgt_mask, tgt_kpm, memory_mask, memory_kpm):
    (wq1, wk1, wv1, wo1, g1, b1,
     wq2, wk2, wv2, wo2, g2, b2,
     wf1, bf1, wf2, bf2, g3, b3) = params

    def heads_cols(w):                      # (D, H*dk) [in,out] -> (H, D, dk)
        return jnp.transpose(w.reshape(D_MODEL, N_HEAD, D_K), (1, 0, 2))

    def flat(per_head):                     # (H, D, D) -> (D, H*D) lane-major head blocks
        return jnp.transpose(per_head, (1, 0, 2)).reshape(D_MODEL, HD)

    def fold_qk(wq, wk):                    # lane block h = Wq_h Wk_h^T / sqrt(dk)
        return flat(jnp.einsum("hdt,het->hde", heads_cols(wq), heads_cols(wk))
                    / math.sqrt(D_K))

    def fold_vo(wv, wo):                    # lane block h = Wv_h Wo_h
        return flat(jnp.einsum("hdt,htm->hdm", heads_cols(wv),
                               wo.reshape(N_HEAD, D_K, D_MODEL)))

    attn_w = jnp.stack([fold_qk(wq1, wk1), fold_vo(wv1, wo1),
                        fold_qk(wq2, wk2), fold_vo(wv2, wo2)], axis=0)      # (4, D, H*D)

    ffn_w = jnp.zeros((2, D_FF, D_FF), jnp.float32)
    ffn_w = ffn_w.at[0, :D_MODEL, :].set(wf1).at[1, :, :D_MODEL].set(wf2)   # (2, 64, 64)

    def pad_lanes(v):
        return jnp.pad(v, ((0, 0), (0, D_FF - v.shape[1])))
    vecp = jnp.concatenate([pad_lanes(g1), pad_lanes(b1),
                            pad_lanes(g2), pad_lanes(b2),
                            pad_lanes(g3), pad_lanes(b3),
                            bf1, pad_lanes(bf2)], axis=0)                   # (8, 64)

    # Combine attn_mask + key_padding_mask into one additive bias, head-tiled so the
    # kernel's head-stacked (H*Q, K) score block can add it directly.
    sa_mask = jnp.logical_or(tgt_mask[None, :, :], tgt_kpm[:, None, :])         # (B, Q, Q)
    ca_mask = jnp.logical_or(memory_mask[None, :, :], memory_kpm[:, None, :])   # (B, Q, K)
    sab = jnp.tile(jnp.where(sa_mask, NEG_INF, 0.0).astype(jnp.float32),
                   (1, N_HEAD, 1))                                              # (B, H*Q, Q)
    cab = jnp.tile(jnp.where(ca_mask, NEG_INF, 0.0).astype(jnp.float32),
                   (1, N_HEAD, 1))                                              # (B, H*Q, K)
    return sab, cab, attn_w, ffn_w, vecp


# ---------------- pallas_call wrapper ------------------------------------------
@jax.jit
def _run_pallas(dec2, mem2, sab, cab, attn_w, ffn_w, vecp):
    full = lambda shape: pl.BlockSpec(shape, lambda i: (0,) * len(shape))
    return pl.pallas_call(
        decoder_layer_kernel,
        out_shape=jax.ShapeDtypeStruct((BQ, D_MODEL), jnp.float32),
        grid=(1,),                                   # single step covers the whole batch
        in_specs=[
            full((BQ, D_MODEL)),                     # stacked decoder input
            full((BK, D_MODEL)),                     # stacked memory
            full((B, HQ, Q_LEN)),                    # self-attn bias (head-tiled)
            full((B, HQ, K_LEN)),                    # cross-attn bias (head-tiled)
            full((4, D_MODEL, HD)),                  # folded attention weights
            full((2, D_FF, D_FF)),                   # FFN weights slab
            full((8, D_FF)),                         # gains / biases slab
        ],
        out_specs=full((BQ, D_MODEL)),
    )(dec2, mem2, sab, cab, attn_w, ffn_w, vecp)


def decoder_layer(dec, mem, prepared):
    sab, cab, attn_w, ffn_w, vecp = prepared
    dec2 = dec.reshape(BQ, D_MODEL)
    mem2 = mem.reshape(BK, D_MODEL)
    out2 = _run_pallas(dec2, mem2, sab, cab, attn_w, ffn_w, vecp)
    return out2.reshape(B, Q_LEN, D_MODEL)


# ---------------- pure-JAX reference (mirrors the PyTorch module) --------------
def ref_mha(xq, xkv, wq, wk, wv, wo, attn_mask, kpm):
    Bq, q, d = xq.shape
    k = xkv.shape[1]
    Q = (xq @ wq).reshape(Bq, q, N_HEAD, D_K).transpose(0, 2, 1, 3)
    K = (xkv @ wk).reshape(Bq, k, N_HEAD, D_K).transpose(0, 2, 1, 3)
    V = (xkv @ wv).reshape(Bq, k, N_HEAD, D_K).transpose(0, 2, 1, 3)
    s = jnp.einsum("bhqd,bhkd->bhqk", Q, K) / math.sqrt(D_K)
    mask = jnp.logical_or(attn_mask[None, None, :, :], kpm[:, None, None, :])
    s = jnp.where(mask, NEG_INF, s)
    p = jax.nn.softmax(s, axis=-1)
    ctx = jnp.einsum("bhqk,bhkd->bhqd", p, V).transpose(0, 2, 1, 3).reshape(Bq, q, d)
    return ctx @ wo


def ref_layernorm(x, g, b):
    mu = jnp.mean(x, axis=-1, keepdims=True)
    var = jnp.mean((x - mu) ** 2, axis=-1, keepdims=True)
    return (x - mu) / jnp.sqrt(var + LN_EPS) * g + b


def ref_decoder_layer(dec, mem, tgt_mask, tgt_kpm, mem_mask, mem_kpm, p):
    (wq1, wk1, wv1, wo1, g1, b1,
     wq2, wk2, wv2, wo2, g2, b2,
     wf1, bf1, wf2, bf2, g3, b3) = p
    y1 = ref_layernorm(dec + ref_mha(dec, dec, wq1, wk1, wv1, wo1, tgt_mask, tgt_kpm), g1, b1)
    y2 = ref_layernorm(y1 + ref_mha(y1, mem, wq2, wk2, wv2, wo2, mem_mask, mem_kpm), g2, b2)
    f = jnp.maximum(y2 @ wf1 + bf1, 0.0) @ wf2 + bf2
    return ref_layernorm(y2 + f, g3, b3)


# ---------------- main ----------------------------------------------------------
if __name__ == "__main__":
    key = jax.random.PRNGKey(0)
    ks = jax.random.split(key, 20)

    def rnd(k, shape, scale=0.1):
        return (scale * jax.random.normal(k, shape)).astype(jnp.float32)

    dec_input = rnd(ks[0], (B, Q_LEN, D_MODEL), 1.0)
    memory = rnd(ks[1], (B, K_LEN, D_MODEL), 1.0)

    # causal target mask (bool): True above the diagonal == masked future positions
    tgt_mask = jnp.triu(jnp.ones((Q_LEN, Q_LEN), jnp.float32), k=1) > 0.5
    # pad last 2 target positions of batch element 1
    tgt_kpm = jnp.zeros((B, Q_LEN), jnp.bool_).at[1, -2:].set(True)
    # no structural memory mask
    memory_mask = jnp.zeros((Q_LEN, K_LEN), jnp.bool_)
    # pad last 3 memory positions of batch element 0
    memory_kpm = jnp.zeros((B, K_LEN), jnp.bool_).at[0, -3:].set(True)

    params = (
        # self-attn WQ, WK, WV, WO  (stored [in, out], no bias)
        rnd(ks[2], (D_MODEL, D_MODEL)), rnd(ks[3], (D_MODEL, D_MODEL)),
        rnd(ks[4], (D_MODEL, D_MODEL)), rnd(ks[5], (D_MODEL, D_MODEL)),
        jnp.ones((1, D_MODEL), jnp.float32), jnp.zeros((1, D_MODEL), jnp.float32),
        # cross-attn WQ, WK, WV, WO
        rnd(ks[6], (D_MODEL, D_MODEL)), rnd(ks[7], (D_MODEL, D_MODEL)),
        rnd(ks[8], (D_MODEL, D_MODEL)), rnd(ks[9], (D_MODEL, D_MODEL)),
        jnp.ones((1, D_MODEL), jnp.float32), jnp.zeros((1, D_MODEL), jnp.float32),
        # FFN
        rnd(ks[10], (D_MODEL, D_FF)), rnd(ks[11], (1, D_FF)),
        rnd(ks[12], (D_FF, D_MODEL)), rnd(ks[13], (1, D_MODEL)),
        jnp.ones((1, D_MODEL), jnp.float32), jnp.zeros((1, D_MODEL), jnp.float32),
    )

    # one-time (out of the hot path): fold weights, pack slabs, build mask biases
    prepared = prepare_decoder_layer(params, tgt_mask, tgt_kpm, memory_mask, memory_kpm)
    prepared = jax.block_until_ready(prepared)

    out = decoder_layer(dec_input, memory, prepared)
    out = jax.block_until_ready(out)

    ref = ref_decoder_layer(dec_input, memory, tgt_mask, tgt_kpm,
                            memory_mask, memory_kpm, params)
    assert out.shape == (B, Q_LEN, D_MODEL)
    # wrapper-side QK^T / V*O weight folding reassociates the score / context math
    assert jnp.allclose(out, ref, atol=5e-3, rtol=5e-3), (
        f"max abs diff {jnp.max(jnp.abs(out - ref))}")
    print("KERNEL_OK")
</pallas_src>

<mosaic_0001>
module attributes {stable_mosaic.version = 11 : i64} {
  func.func @decoder_layer_kernel(%arg0: i32, %arg1: memref<16x32xf32, #tpu.memory_space<vmem>>, %arg2: memref<32x32xf32, #tpu.memory_space<vmem>>, %arg3: memref<2x32x8xf32, #tpu.memory_space<vmem>>, %arg4: memref<2x32x16xf32, #tpu.memory_space<vmem>>, %arg5: memref<4x32x128xf32, #tpu.memory_space<vmem>>, %arg6: memref<2x64x64xf32, #tpu.memory_space<vmem>>, %arg7: memref<8x64xf32, #tpu.memory_space<vmem>>, %arg8: memref<16x32xf32, #tpu.memory_space<vmem>>) attributes {dimension_semantics = [#tpu.dimension_semantics<arbitrary>], iteration_bounds = array<i64: 1>, scalar_prefetch = 0 : i64, scratch_operands = 0 : i64, tpu.core_type = #tpu.core_type<tc>, window_params = [{pipeline_mode = #tpu.pipeline_mode<synchronous>, transform_indices = @transform_0, window_bounds = array<i64: 16, 32>}, {pipeline_mode = #tpu.pipeline_mode<synchronous>, transform_indices = @transform_1, window_bounds = array<i64: 32, 32>}, {pipeline_mode = #tpu.pipeline_mode<synchronous>, transform_indices = @transform_2, window_bounds = array<i64: 2, 32, 8>}, {pipeline_mode = #tpu.pipeline_mode<synchronous>, transform_indices = @transform_3, window_bounds = array<i64: 2, 32, 16>}, {pipeline_mode = #tpu.pipeline_mode<synchronous>, transform_indices = @transform_4, window_bounds = array<i64: 4, 32, 128>}, {pipeline_mode = #tpu.pipeline_mode<synchronous>, transform_indices = @transform_5, window_bounds = array<i64: 2, 64, 64>}, {pipeline_mode = #tpu.pipeline_mode<synchronous>, transform_indices = @transform_6, window_bounds = array<i64: 8, 64>}, {pipeline_mode = #tpu.pipeline_mode<synchronous>, transform_indices = @transform_7, window_bounds = array<i64: 16, 32>}]} {
    %c0 = arith.constant 0 : index
    %c0_0 = arith.constant 0 : index
    %0 = vector.load %arg1[%c0, %c0_0] : memref<16x32xf32, #tpu.memory_space<vmem>>, vector<16x32xf32>
    %c0_1 = arith.constant 0 : index
    %c0_2 = arith.constant 0 : index
    %1 = vector.load %arg2[%c0_1, %c0_2] : memref<32x32xf32, #tpu.memory_space<vmem>>, vector<32x32xf32>
    %c0_3 = arith.constant 0 : index
    %c0_4 = arith.constant 0 : index
    %2 = vector.load %arg7[%c0_3, %c0_4] : memref<8x64xf32, #tpu.memory_space<vmem>>, vector<8x64xf32>
    %3 = vector.extract_strided_slice %2 {offsets = [0, 0], sizes = [1, 32], strides = [1, 1]} : vector<8x64xf32> to vector<1x32xf32>
    %4 = vector.extract_strided_slice %2 {offsets = [1, 0], sizes = [1, 32], strides = [1, 1]} : vector<8x64xf32> to vector<1x32xf32>
    %5 = vector.extract_strided_slice %2 {offsets = [2, 0], sizes = [1, 32], strides = [1, 1]} : vector<8x64xf32> to vector<1x32xf32>
    %6 = vector.extract_strided_slice %2 {offsets = [3, 0], sizes = [1, 32], strides = [1, 1]} : vector<8x64xf32> to vector<1x32xf32>
    %7 = vector.extract_strided_slice %2 {offsets = [4, 0], sizes = [1, 32], strides = [1, 1]} : vector<8x64xf32> to vector<1x32xf32>
    %8 = vector.extract_strided_slice %2 {offsets = [5, 0], sizes = [1, 32], strides = [1, 1]} : vector<8x64xf32> to vector<1x32xf32>
    %9 = vector.extract_strided_slice %2 {offsets = [6, 0], sizes = [1, 64], strides = [1, 1]} : vector<8x64xf32> to vector<1x64xf32>
    %10 = vector.extract_strided_slice %2 {offsets = [7, 0], sizes = [1, 32], strides = [1, 1]} : vector<8x64xf32> to vector<1x32xf32>
    %c0_5 = arith.constant 0 : index
    %c0_6 = arith.constant 0 : index
    %c0_7 = arith.constant 0 : index
    %11 = vector.load %arg5[%c0_5, %c0_6, %c0_7] : memref<4x32x128xf32, #tpu.memory_space<vmem>>, vector<1x32x128xf32>
    %12 = vector.shape_cast %11 : vector<1x32x128xf32> to vector<32x128xf32>
    %c1 = arith.constant 1 : index
    %c0_8 = arith.constant 0 : index
    %c0_9 = arith.constant 0 : index
    %13 = vector.load %arg5[%c1, %c0_8, %c0_9] : memref<4x32x128xf32, #tpu.memory_space<vmem>>, vector<1x32x128xf32>
    %14 = vector.shape_cast %13 : vector<1x32x128xf32> to vector<32x128xf32>
    %c2 = arith.constant 2 : index
    %c0_10 = arith.constant 0 : index
    %c0_11 = arith.constant 0 : index
    %15 = vector.load %arg5[%c2, %c0_10, %c0_11] : memref<4x32x128xf32, #tpu.memory_space<vmem>>, vector<1x32x128xf32>
    %16 = vector.shape_cast %15 : vector<1x32x128xf32> to vector<32x128xf32>
    %c3 = arith.constant 3 : index
    %c0_12 = arith.constant 0 : index
    %c0_13 = arith.constant 0 : index
    %17 = vector.load %arg5[%c3, %c0_12, %c0_13] : memref<4x32x128xf32, #tpu.memory_space<vmem>>, vector<1x32x128xf32>
    %18 = vector.shape_cast %17 : vector<1x32x128xf32> to vector<32x128xf32>
    %c0_14 = arith.constant 0 : index
    %c0_15 = arith.constant 0 : index
    %c0_16 = arith.constant 0 : index
    %19 = vector.load %arg6[%c0_14, %c0_15, %c0_16] : memref<2x64x64xf32, #tpu.memory_space<vmem>>, vector<1x64x64xf32>
    %20 = vector.shape_cast %19 : vector<1x64x64xf32> to vector<64x64xf32>
    %21 = vector.extract_strided_slice %20 {offsets = [0, 0], sizes = [32, 64], strides = [1, 1]} : vector<64x64xf32> to vector<32x64xf32>
    %c1_17 = arith.constant 1 : index
    %c0_18 = arith.constant 0 : index
    %c0_19 = arith.constant 0 : index
    %22 = vector.load %arg6[%c1_17, %c0_18, %c0_19] : memref<2x64x64xf32, #tpu.memory_space<vmem>>, vector<1x64x64xf32>
    %23 = vector.shape_cast %22 : vector<1x64x64xf32> to vector<64x64xf32>
    %24 = vector.extract_strided_slice %23 {offsets = [0, 0], sizes = [64, 32], strides = [1, 1]} : vector<64x64xf32> to vector<64x32xf32>
    %cst = arith.constant dense<0.000000e+00> : vector<16x128xf32>
    %25 = tpu.matmul %0, %12, %cst {dimension_numbers = #tpu.dot_dimension_numbers<[1], [0], [0], [1], [0, 0, 1, 1], [], []>} : vector<16x32xf32>, vector<32x128xf32>, vector<16x128xf32> -> vector<16x128xf32>
    %cst_20 = arith.constant dense<0.000000e+00> : vector<16x128xf32>
    %26 = tpu.matmul %0, %14, %cst_20 {dimension_numbers = #tpu.dot_dimension_numbers<[1], [0], [0], [1], [0, 0, 1, 1], [], []>} : vector<16x32xf32>, vector<32x128xf32>, vector<16x128xf32> -> vector<16x128xf32>
    %27 = tpu.transpose %0, [1, 0] : vector<16x32xf32> -> vector<32x16xf32>
    %28 = vector.extract_strided_slice %25 {offsets = [0, 0], sizes = [8, 128], strides = [1, 1]} : vector<16x128xf32> to vector<8x128xf32>
    %29 = vector.extract_strided_slice %27 {offsets = [0, 0], sizes = [32, 8], strides = [1, 1]} : vector<32x16xf32> to vector<32x8xf32>
    %30 = vector.extract_strided_slice %26 {offsets = [0, 0], sizes = [8, 128], strides = [1, 1]} : vector<16x128xf32> to vector<8x128xf32>
    %c0_21 = arith.constant 0 : index
    %c0_22 = arith.constant 0 : index
    %c0_23 = arith.constant 0 : index
    %31 = vector.load %arg3[%c0_21, %c0_22, %c0_23] : memref<2x32x8xf32, #tpu.memory_space<vmem>>, vector<1x32x8xf32>
    %32 = vector.shape_cast %31 : vector<1x32x8xf32> to vector<32x8xf32>
    %33 = vector.extract_strided_slice %28 {offsets = [0, 0], sizes = [8, 32], strides = [1, 1]} : vector<8x128xf32> to vector<8x32xf32>
    %34 = vector.extract_strided_slice %28 {offsets = [0, 32], sizes = [8, 32], strides = [1, 1]} : vector<8x128xf32> to vector<8x32xf32>
    %35 = vector.extract_strided_slice %28 {offsets = [0, 64], sizes = [8, 32], strides = [1, 1]} : vector<8x128xf32> to vector<8x32xf32>
    %36 = vector.extract_strided_slice %28 {offsets = [0, 96], sizes = [8, 32], strides = [1, 1]} : vector<8x128xf32> to vector<8x32xf32>
    %37 = tpu.concatenate %33, %34, %35, %36 in 0 : vector<8x32xf32>, vector<8x32xf32>, vector<8x32xf32>, vector<8x32xf32> -> vector<32x32xf32>
    %cst_24 = arith.constant dense<0.000000e+00> : vector<32x8xf32>
    %38 = tpu.matmul %37, %29, %cst_24 {dimension_numbers = #tpu.dot_dimension_numbers<[1], [0], [0], [1], [0, 0, 1, 1], [], []>} : vector<32x32xf32>, vector<32x8xf32>, vector<32x8xf32> -> vector<32x8xf32>
    %39 = arith.addf %38, %32 : vector<32x8xf32>
    %cst_25 = arith.constant dense<0xFF800000> : vector<32xf32>
    %40 = vector.multi_reduction <maximumf>, %39, %cst_25 [1] : vector<32x8xf32> to vector<32xf32>
    %41 = vector.shape_cast %40 : vector<32xf32> to vector<32x1xf32>
    %42 = vector.broadcast %41 : vector<32x1xf32> to vector<32x8xf32>
    %43 = arith.subf %39, %42 : vector<32x8xf32>
    %44 = math.exp %43 : vector<32x8xf32>
    %cst_26 = arith.constant dense<0.000000e+00> : vector<32xf32>
    %45 = vector.multi_reduction <add>, %44, %cst_26 [1] : vector<32x8xf32> to vector<32xf32>
    %46 = vector.shape_cast %45 : vector<32xf32> to vector<32x1xf32>
    %47 = tpu.reciprocal %46 : vector<32x1xf32> -> vector<32x1xf32>
    %48 = vector.broadcast %47 : vector<32x1xf32> to vector<32x8xf32>
    %49 = arith.mulf %44, %48 : vector<32x8xf32>
    %cst_27 = arith.constant dense<0.000000e+00> : vector<32x128xf32>
    %50 = tpu.matmul %49, %30, %cst_27 {dimension_numbers = #tpu.dot_dimension_numbers<[1], [0], [0], [1], [0, 0, 1, 1], [], []>} : vector<32x8xf32>, vector<8x128xf32>, vector<32x128xf32> -> vector<32x128xf32>
    %51 = vector.extract_strided_slice %50 {offsets = [0, 0], sizes = [8, 32], strides = [1, 1]} : vector<32x128xf32> to vector<8x32xf32>
    %52 = vector.extract_strided_slice %50 {offsets = [8, 32], sizes = [8, 32], strides = [1, 1]} : vector<32x128xf32> to vector<8x32xf32>
    %53 = arith.addf %51, %52 : vector<8x32xf32>
    %54 = vector.extract_strided_slice %50 {offsets = [16, 64], sizes = [8, 32], strides = [1, 1]} : vector<32x128xf32> to vector<8x32xf32>
    %55 = arith.addf %53, %54 : vector<8x32xf32>
    %56 = vector.extract_strided_slice %50 {offsets = [24, 96], sizes = [8, 32], strides = [1, 1]} : vector<32x128xf32> to vector<8x32xf32>
    %57 = arith.addf %55, %56 : vector<8x32xf32>
    %58 = vector.extract_strided_slice %25 {offsets = [8, 0], sizes = [8, 128], strides = [1, 1]} : vector<16x128xf32> to vector<8x128xf32>
    %59 = vector.extract_strided_slice %27 {offsets = [0, 8], sizes = [32, 8], strides = [1, 1]} : vector<32x16xf32> to vector<32x8xf32>
    %60 = vector.extract_strided_slice %26 {offsets = [8, 0], sizes = [8, 128], strides = [1, 1]} : vector<16x128xf32> to vector<8x128xf32>
    %c1_28 = arith.constant 1 : index
    %c0_29 = arith.constant 0 : index
    %c0_30 = arith.constant 0 : index
    %61 = vector.load %arg3[%c1_28, %c0_29, %c0_30] : memref<2x32x8xf32, #tpu.memory_space<vmem>>, vector<1x32x8xf32>
    %62 = vector.shape_cast %61 : vector<1x32x8xf32> to vector<32x8xf32>
    %63 = vector.extract_strided_slice %58 {offsets = [0, 0], sizes = [8, 32], strides = [1, 1]} : vector<8x128xf32> to vector<8x32xf32>
    %64 = vector.extract_strided_slice %58 {offsets = [0, 32], sizes = [8, 32], strides = [1, 1]} : vector<8x128xf32> to vector<8x32xf32>
    %65 = vector.extract_strided_slice %58 {offsets = [0, 64], sizes = [8, 32], strides = [1, 1]} : vector<8x128xf32> to vector<8x32xf32>
    %66 = vector.extract_strided_slice %58 {offsets = [0, 96], sizes = [8, 32], strides = [1, 1]} : vector<8x128xf32> to vector<8x32xf32>
    %67 = tpu.concatenate %63, %64, %65, %66 in 0 : vector<8x32xf32>, vector<8x32xf32>, vector<8x32xf32>, vector<8x32xf32> -> vector<32x32xf32>
    %cst_31 = arith.constant dense<0.000000e+00> : vector<32x8xf32>
    %68 = tpu.matmul %67, %59, %cst_31 {dimension_numbers = #tpu.dot_dimension_numbers<[1], [0], [0], [1], [0, 0, 1, 1], [], []>} : vector<32x32xf32>, vector<32x8xf32>, vector<32x8xf32> -> vector<32x8xf32>
    %69 = arith.addf %68, %62 : vector<32x8xf32>
    %cst_32 = arith.constant dense<0xFF800000> : vector<32xf32>
    %70 = vector.multi_reduction <maximumf>, %69, %cst_32 [1] : vector<32x8xf32> to vector<32xf32>
    %71 = vector.shape_cast %70 : vector<32xf32> to vector<32x1xf32>
    %72 = vector.broadcast %71 : vector<32x1xf32> to vector<32x8xf32>
    %73 = arith.subf %69, %72 : vector<32x8xf32>
    %74 = math.exp %73 : vector<32x8xf32>
    %cst_33 = arith.constant dense<0.000000e+00> : vector<32xf32>
    %75 = vector.multi_reduction <add>, %74, %cst_33 [1] : vector<32x8xf32> to vector<32xf32>
    %76 = vector.shape_cast %75 : vector<32xf32> to vector<32x1xf32>
    %77 = tpu.reciprocal %76 : vector<32x1xf32> -> vector<32x1xf32>
    %78 = vector.broadcast %77 : vector<32x1xf32> to vector<32x8xf32>
    %79 = arith.mulf %74, %78 : vector<32x8xf32>
    %cst_34 = arith.constant dense<0.000000e+00> : vector<32x128xf32>
    %80 = tpu.matmul %79, %60, %cst_34 {dimension_numbers = #tpu.dot_dimension_numbers<[1], [0], [0], [1], [0, 0, 1, 1], [], []>} : vector<32x8xf32>, vector<8x128xf32>, vector<32x128xf32> -> vector<32x128xf32>
    %81 = vector.extract_strided_slice %80 {offsets = [0, 0], sizes = [8, 32], strides = [1, 1]} : vector<32x128xf32> to vector<8x32xf32>
    %82 = vector.extract_strided_slice %80 {offsets = [8, 32], sizes = [8, 32], strides = [1, 1]} : vector<32x128xf32> to vector<8x32xf32>
    %83 = arith.addf %81, %82 : vector<8x32xf32>
    %84 = vector.extract_strided_slice %80 {offsets = [16, 64], sizes = [8, 32], strides = [1, 1]} : vector<32x128xf32> to vector<8x32xf32>
    %85 = arith.addf %83, %84 : vector<8x32xf32>
    %86 = vector.extract_strided_slice %80 {offsets = [24, 96], sizes = [8, 32], strides = [1, 1]} : vector<32x128xf32> to vector<8x32xf32>
    %87 = arith.addf %85, %86 : vector<8x32xf32>
    %88 = tpu.concatenate %57, %87 in 0 : vector<8x32xf32>, vector<8x32xf32> -> vector<16x32xf32>
    %89 = arith.addf %0, %88 : vector<16x32xf32>
    %cst_35 = arith.constant dense<0.000000e+00> : vector<16xf32>
    %90 = vector.multi_reduction <add>, %89, %cst_35 [1] : vector<16x32xf32> to vector<16xf32>
    %91 = vector.shape_cast %90 : vector<16xf32> to vector<16x1xf32>
    %cst_36 = arith.constant 3.200000e+01 : f32
    %92 = vector.broadcast %cst_36 : f32 to vector<16x1xf32>
    %93 = arith.divf %91, %92 : vector<16x1xf32>
    %94 = vector.broadcast %93 : vector<16x1xf32> to vector<16x32xf32>
    %95 = arith.subf %89, %94 : vector<16x32xf32>
    %96 = arith.mulf %95, %95 : vector<16x32xf32>
    %cst_37 = arith.constant dense<0.000000e+00> : vector<16xf32>
    %97 = vector.multi_reduction <add>, %96, %cst_37 [1] : vector<16x32xf32> to vector<16xf32>
    %98 = vector.shape_cast %97 : vector<16xf32> to vector<16x1xf32>
    %cst_38 = arith.constant 3.200000e+01 : f32
    %99 = vector.broadcast %cst_38 : f32 to vector<16x1xf32>
    %100 = arith.divf %98, %99 : vector<16x1xf32>
    %cst_39 = arith.constant 9.99999974E-6 : f32
    %101 = vector.broadcast %cst_39 : f32 to vector<16x1xf32>
    %102 = arith.addf %100, %101 : vector<16x1xf32>
    %103 = math.rsqrt %102 : vector<16x1xf32>
    %104 = vector.broadcast %103 : vector<16x1xf32> to vector<16x32xf32>
    %105 = arith.mulf %95, %104 : vector<16x32xf32>
    %106 = vector.broadcast %3 : vector<1x32xf32> to vector<16x32xf32>
    %107 = arith.mulf %105, %106 : vector<16x32xf32>
    %108 = vector.broadcast %4 : vector<1x32xf32> to vector<16x32xf32>
    %109 = arith.addf %107, %108 : vector<16x32xf32>
    %cst_40 = arith.constant dense<0.000000e+00> : vector<16x128xf32>
    %110 = tpu.matmul %109, %16, %cst_40 {dimension_numbers = #tpu.dot_dimension_numbers<[1], [0], [0], [1], [0, 0, 1, 1], [], []>} : vector<16x32xf32>, vector<32x128xf32>, vector<16x128xf32> -> vector<16x128xf32>
    %cst_41 = arith.constant dense<0.000000e+00> : vector<32x128xf32>
    %111 = tpu.matmul %1, %18, %cst_41 {dimension_numbers = #tpu.dot_dimension_numbers<[1], [0], [0], [1], [0, 0, 1, 1], [], []>} : vector<32x32xf32>, vector<32x128xf32>, vector<32x128xf32> -> vector<32x128xf32>
    %112 = tpu.transpose %1, [1, 0] : vector<32x32xf32> -> vector<32x32xf32>
    %113 = vector.extract_strided_slice %110 {offsets = [0, 0], sizes = [8, 128], strides = [1, 1]} : vector<16x128xf32> to vector<8x128xf32>
    %114 = vector.extract_strided_slice %112 {offsets = [0, 0], sizes = [32, 16], strides = [1, 1]} : vector<32x32xf32> to vector<32x16xf32>
    %115 = vector.extract_strided_slice %111 {offsets = [0, 0], sizes = [16, 128], strides = [1, 1]} : vector<32x128xf32> to vector<16x128xf32>
    %c0_42 = arith.constant 0 : index
    %c0_43 = arith.constant 0 : index
    %c0_44 = arith.constant 0 : index
    %116 = vector.load %arg4[%c0_42, %c0_43, %c0_44] : memref<2x32x16xf32, #tpu.memory_space<vmem>>, vector<1x32x16xf32>
    %117 = vector.shape_cast %116 : vector<1x32x16xf32> to vector<32x16xf32>
    %118 = vector.extract_strided_slice %113 {offsets = [0, 0], sizes = [8, 32], strides = [1, 1]} : vector<8x128xf32> to vector<8x32xf32>
    %119 = vector.extract_strided_slice %113 {offsets = [0, 32], sizes = [8, 32], strides = [1, 1]} : vector<8x128xf32> to vector<8x32xf32>
    %120 = vector.extract_strided_slice %113 {offsets = [0, 64], sizes = [8, 32], strides = [1, 1]} : vector<8x128xf32> to vector<8x32xf32>
    %121 = vector.extract_strided_slice %113 {offsets = [0, 96], sizes = [8, 32], strides = [1, 1]} : vector<8x128xf32> to vector<8x32xf32>
    %122 = tpu.concatenate %118, %119, %120, %121 in 0 : vector<8x32xf32>, vector<8x32xf32>, vector<8x32xf32>, vector<8x32xf32> -> vector<32x32xf32>
    %cst_45 = arith.constant dense<0.000000e+00> : vector<32x16xf32>
    %123 = tpu.matmul %122, %114, %cst_45 {dimension_numbers = #tpu.dot_dimension_numbers<[1], [0], [0], [1], [0, 0, 1, 1], [], []>} : vector<32x32xf32>, vector<32x16xf32>, vector<32x16xf32> -> vector<32x16xf32>
    %124 = arith.addf %123, %117 : vector<32x16xf32>
    %cst_46 = arith.constant dense<0xFF800000> : vector<32xf32>
    %125 = vector.multi_reduction <maximumf>, %124, %cst_46 [1] : vector<32x16xf32> to vector<32xf32>
    %126 = vector.shape_cast %125 : vector<32xf32> to vector<32x1xf32>
    %127 = vector.broadcast %126 : vector<32x1xf32> to vector<32x16xf32>
    %128 = arith.subf %124, %127 : vector<32x16xf32>
    %129 = math.exp %128 : vector<32x16xf32>
    %cst_47 = arith.constant dense<0.000000e+00> : vector<32xf32>
    %130 = vector.multi_reduction <add>, %129, %cst_47 [1] : vector<32x16xf32> to vector<32xf32>
    %131 = vector.shape_cast %130 : vector<32xf32> to vector<32x1xf32>
    %132 = tpu.reciprocal %131 : vector<32x1xf32> -> vector<32x1xf32>
    %133 = vector.broadcast %132 : vector<32x1xf32> to vector<32x16xf32>
    %134 = arith.mulf %129, %133 : vector<32x16xf32>
    %cst_48 = arith.constant dense<0.000000e+00> : vector<32x128xf32>
    %135 = tpu.matmul %134, %115, %cst_48 {dimension_numbers = #tpu.dot_dimension_numbers<[1], [0], [0], [1], [0, 0, 1, 1], [], []>} : vector<32x16xf32>, vector<16x128xf32>, vector<32x128xf32> -> vector<32x128xf32>
    %136 = vector.extract_strided_slice %135 {offsets = [0, 0], sizes = [8, 32], strides = [1, 1]} : vector<32x128xf32> to vector<8x32xf32>
    %137 = vector.extract_strided_slice %135 {offsets = [8, 32], sizes = [8, 32], strides = [1, 1]} : vector<32x128xf32> to vector<8x32xf32>
    %138 = arith.addf %136, %137 : vector<8x32xf32>
    %139 = vector.extract_strided_slice %135 {offsets = [16, 64], sizes = [8, 32], strides = [1, 1]} : vector<32x128xf32> to vector<8x32xf32>
    %140 = arith.addf %138, %139 : vector<8x32xf32>
    %141 = vector.extract_strided_slice %135 {offsets = [24, 96], sizes = [8, 32], strides = [1, 1]} : vector<32x128xf32> to vector<8x32xf32>
    %142 = arith.addf %140, %141 : vector<8x32xf32>
    %143 = vector.extract_strided_slice %110 {offsets = [8, 0], sizes = [8, 128], strides = [1, 1]} : vector<16x128xf32> to vector<8x128xf32>
    %144 = vector.extract_strided_slice %112 {offsets = [0, 16], sizes = [32, 16], strides = [1, 1]} : vector<32x32xf32> to vector<32x16xf32>
    %145 = vector.extract_strided_slice %111 {offsets = [16, 0], sizes = [16, 128], strides = [1, 1]} : vector<32x128xf32> to vector<16x128xf32>
    %c1_49 = arith.constant 1 : index
    %c0_50 = arith.constant 0 : index
    %c0_51 = arith.constant 0 : index
    %146 = vector.load %arg4[%c1_49, %c0_50, %c0_51] : memref<2x32x16xf32, #tpu.memory_space<vmem>>, vector<1x32x16xf32>
    %147 = vector.shape_cast %146 : vector<1x32x16xf32> to vector<32x16xf32>
    %148 = vector.extract_strided_slice %143 {offsets = [0, 0], sizes = [8, 32], strides = [1, 1]} : vector<8x128xf32> to vector<8x32xf32>
    %149 = vector.extract_strided_slice %143 {offsets = [0, 32], sizes = [8, 32], strides = [1, 1]} : vector<8x128xf32> to vector<8x32xf32>
    %150 = vector.extract_strided_slice %143 {offsets = [0, 64], sizes = [8, 32], strides = [1, 1]} : vector<8x128xf32> to vector<8x32xf32>
    %151 = vector.extract_strided_slice %143 {offsets = [0, 96], sizes = [8, 32], strides = [1, 1]} : vector<8x128xf32> to vector<8x32xf32>
    %152 = tpu.concatenate %148, %149, %150, %151 in 0 : vector<8x32xf32>, vector<8x32xf32>, vector<8x32xf32>, vector<8x32xf32> -> vector<32x32xf32>
    %cst_52 = arith.constant dense<0.000000e+00> : vector<32x16xf32>
    %153 = tpu.matmul %152, %144, %cst_52 {dimension_numbers = #tpu.dot_dimension_numbers<[1], [0], [0], [1], [0, 0, 1, 1], [], []>} : vector<32x32xf32>, vector<32x16xf32>, vector<32x16xf32> -> vector<32x16xf32>
    %154 = arith.addf %153, %147 : vector<32x16xf32>
    %cst_53 = arith.constant dense<0xFF800000> : vector<32xf32>
    %155 = vector.multi_reduction <maximumf>, %154, %cst_53 [1] : vector<32x16xf32> to vector<32xf32>
    %156 = vector.shape_cast %155 : vector<32xf32> to vector<32x1xf32>
    %157 = vector.broadcast %156 : vector<32x1xf32> to vector<32x16xf32>
    %158 = arith.subf %154, %157 : vector<32x16xf32>
    %159 = math.exp %158 : vector<32x16xf32>
    %cst_54 = arith.constant dense<0.000000e+00> : vector<32xf32>
    %160 = vector.multi_reduction <add>, %159, %cst_54 [1] : vector<32x16xf32> to vector<32xf32>
    %161 = vector.shape_cast %160 : vector<32xf32> to vector<32x1xf32>
    %162 = tpu.reciprocal %161 : vector<32x1xf32> -> vector<32x1xf32>
    %163 = vector.broadcast %162 : vector<32x1xf32> to vector<32x16xf32>
    %164 = arith.mulf %159, %163 : vector<32x16xf32>
    %cst_55 = arith.constant dense<0.000000e+00> : vector<32x128xf32>
    %165 = tpu.matmul %164, %145, %cst_55 {dimension_numbers = #tpu.dot_dimension_numbers<[1], [0], [0], [1], [0, 0, 1, 1], [], []>} : vector<32x16xf32>, vector<16x128xf32>, vector<32x128xf32> -> vector<32x128xf32>
    %166 = vector.extract_strided_slice %165 {offsets = [0, 0], sizes = [8, 32], strides = [1, 1]} : vector<32x128xf32> to vector<8x32xf32>
    %167 = vector.extract_strided_slice %165 {offsets = [8, 32], sizes = [8, 32], strides = [1, 1]} : vector<32x128xf32> to vector<8x32xf32>
    %168 = arith.addf %166, %167 : vector<8x32xf32>
    %169 = vector.extract_strided_slice %165 {offsets = [16, 64], sizes = [8, 32], strides = [1, 1]} : vector<32x128xf32> to vector<8x32xf32>
    %170 = arith.addf %168, %169 : vector<8x32xf32>
    %171 = vector.extract_strided_slice %165 {offsets = [24, 96], sizes = [8, 32], strides = [1, 1]} : vector<32x128xf32> to vector<8x32xf32>
    %172 = arith.addf %170, %171 : vector<8x32xf32>
    %173 = tpu.concatenate %142, %172 in 0 : vector<8x32xf32>, vector<8x32xf32> -> vector<16x32xf32>
    %174 = arith.addf %109, %173 : vector<16x32xf32>
    %cst_56 = arith.constant dense<0.000000e+00> : vector<16xf32>
    %175 = vector.multi_reduction <add>, %174, %cst_56 [1] : vector<16x32xf32> to vector<16xf32>
    %176 = vector.shape_cast %175 : vector<16xf32> to vector<16x1xf32>
    %cst_57 = arith.constant 3.200000e+01 : f32
    %177 = vector.broadcast %cst_57 : f32 to vector<16x1xf32>
    %178 = arith.divf %176, %177 : vector<16x1xf32>
    %179 = vector.broadcast %178 : vector<16x1xf32> to vector<16x32xf32>
    %180 = arith.subf %174, %179 : vector<16x32xf32>
    %181 = arith.mulf %180, %180 : vector<16x32xf32>
    %cst_58 = arith.constant dense<0.000000e+00> : vector<16xf32>
    %182 = vector.multi_reduction <add>, %181, %cst_58 [1] : vector<16x32xf32> to vector<16xf32>
    %183 = vector.shape_cast %182 : vector<16xf32> to vector<16x1xf32>
    %cst_59 = arith.constant 3.200000e+01 : f32
    %184 = vector.broadcast %cst_59 : f32 to vector<16x1xf32>
    %185 = arith.divf %183, %184 : vector<16x1xf32>
    %cst_60 = arith.constant 9.99999974E-6 : f32
    %186 = vector.broadcast %cst_60 : f32 to vector<16x1xf32>
    %187 = arith.addf %185, %186 : vector<16x1xf32>
    %188 = math.rsqrt %187 : vector<16x1xf32>
    %189 = vector.broadcast %188 : vector<16x1xf32> to vector<16x32xf32>
    %190 = arith.mulf %180, %189 : vector<16x32xf32>
    %191 = vector.broadcast %5 : vector<1x32xf32> to vector<16x32xf32>
    %192 = arith.mulf %190, %191 : vector<16x32xf32>
    %193 = vector.broadcast %6 : vector<1x32xf32> to vector<16x32xf32>
    %194 = arith.addf %192, %193 : vector<16x32xf32>
    %cst_61 = arith.constant dense<0.000000e+00> : vector<16x64xf32>
    %195 = tpu.matmul %194, %21, %cst_61 {dimension_numbers = #tpu.dot_dimension_numbers<[1], [0], [0], [1], [0, 0, 1, 1], [], []>} : vector<16x32xf32>, vector<32x64xf32>, vector<16x64xf32> -> vector<16x64xf32>
    %196 = vector.broadcast %9 : vector<1x64xf32> to vector<16x64xf32>
    %197 = arith.addf %195, %196 : vector<16x64xf32>
    %cst_62 = arith.constant 0.000000e+00 : f32
    %198 = vector.broadcast %cst_62 : f32 to vector<16x64xf32>
    %199 = arith.maximumf %197, %198 : vector<16x64xf32>
    %cst_63 = arith.constant dense<0.000000e+00> : vector<16x32xf32>
    %200 = tpu.matmul %199, %24, %cst_63 {dimension_numbers = #tpu.dot_dimension_numbers<[1], [0], [0], [1], [0, 0, 1, 1], [], []>} : vector<16x64xf32>, vector<64x32xf32>, vector<16x32xf32> -> vector<16x32xf32>
    %201 = vector.broadcast %10 : vector<1x32xf32> to vector<16x32xf32>
    %202 = arith.addf %200, %201 : vector<16x32xf32>
    %203 = arith.addf %194, %202 : vector<16x32xf32>
    %cst_64 = arith.constant dense<0.000000e+00> : vector<16xf32>
    %204 = vector.multi_reduction <add>, %203, %cst_64 [1] : vector<16x32xf32> to vector<16xf32>
    %205 = vector.shape_cast %204 : vector<16xf32> to vector<16x1xf32>
    %cst_65 = arith.constant 3.200000e+01 : f32
    %206 = vector.broadcast %cst_65 : f32 to vector<16x1xf32>
    %207 = arith.divf %205, %206 : vector<16x1xf32>
    %208 = vector.broadcast %207 : vector<16x1xf32> to vector<16x32xf32>
    %209 = arith.subf %203, %208 : vector<16x32xf32>
    %210 = arith.mulf %209, %209 : vector<16x32xf32>
    %cst_66 = arith.constant dense<0.000000e+00> : vector<16xf32>
    %211 = vector.multi_reduction <add>, %210, %cst_66 [1] : vector<16x32xf32> to vector<16xf32>
    %212 = vector.shape_cast %211 : vector<16xf32> to vector<16x1xf32>
    %cst_67 = arith.constant 3.200000e+01 : f32
    %213 = vector.broadcast %cst_67 : f32 to vector<16x1xf32>
    %214 = arith.divf %212, %213 : vector<16x1xf32>
    %cst_68 = arith.constant 9.99999974E-6 : f32
    %215 = vector.broadcast %cst_68 : f32 to vector<16x1xf32>
    %216 = arith.addf %214, %215 : vector<16x1xf32>
    %217 = math.rsqrt %216 : vector<16x1xf32>
    %218 = vector.broadcast %217 : vector<16x1xf32> to vector<16x32xf32>
    %219 = arith.mulf %209, %218 : vector<16x32xf32>
    %220 = vector.broadcast %7 : vector<1x32xf32> to vector<16x32xf32>
    %221 = arith.mulf %219, %220 : vector<16x32xf32>
    %222 = vector.broadcast %8 : vector<1x32xf32> to vector<16x32xf32>
    %223 = arith.addf %221, %222 : vector<16x32xf32>
    %c0_69 = arith.constant 0 : index
    %c0_70 = arith.constant 0 : index
    %224 = vector.load %arg8[%c0_69, %c0_70] : memref<16x32xf32, #tpu.memory_space<vmem>>, vector<16x32xf32>
    tpu.vector_store %arg8[%c0_69, %c0_70], %223 {strides = array<i32>} : memref<16x32xf32, #tpu.memory_space<vmem>>, vector<16x32xf32>,
    return
  }
  func.func @transform_0(%arg0: i32) -> (i32, i32) {
    %c0_i32 = arith.constant 0 : i32
    %c0_i32_0 = arith.constant 0 : i32
    %c0_i32_1 = arith.constant 0 : i32
    return %c0_i32, %c0_i32_0 : i32, i32
  }
  func.func @transform_1(%arg0: i32) -> (i32, i32) {
    %c0_i32 = arith.constant 0 : i32
    %c0_i32_0 = arith.constant 0 : i32
    %c0_i32_1 = arith.constant 0 : i32
    return %c0_i32, %c0_i32_0 : i32, i32
  }
  func.func @transform_2(%arg0: i32) -> (i32, i32, i32) {
    %c0_i32 = arith.constant 0 : i32
    %c0_i32_0 = arith.constant 0 : i32
    %c0_i32_1 = arith.constant 0 : i32
    %c0_i32_2 = arith.constant 0 : i32
    return %c0_i32, %c0_i32_0, %c0_i32_1 : i32, i32, i32
  }
  func.func @transform_3(%arg0: i32) -> (i32, i32, i32) {
    %c0_i32 = arith.constant 0 : i32
    %c0_i32_0 = arith.constant 0 : i32
    %c0_i32_1 = arith.constant 0 : i32
    %c0_i32_2 = arith.constant 0 : i32
    return %c0_i32, %c0_i32_0, %c0_i32_1 : i32, i32, i32
  }
  func.func @transform_4(%arg0: i32) -> (i32, i32, i32) {
    %c0_i32 = arith.constant 0 : i32
    %c0_i32_0 = arith.constant 0 : i32
    %c0_i32_1 = arith.constant 0 : i32
    %c0_i32_2 = arith.constant 0 : i32
    return %c0_i32, %c0_i32_0, %c0_i32_1 : i32, i32, i32
  }
  func.func @transform_5(%arg0: i32) -> (i32, i32, i32) {
    %c0_i32 = arith.constant 0 : i32
    %c0_i32_0 = arith.constant 0 : i32
    %c0_i32_1 = arith.constant 0 : i32
    %c0_i32_2 = arith.constant 0 : i32
    return %c0_i32, %c0_i32_0, %c0_i32_1 : i32, i32, i32
  }
  func.func @transform_6(%arg0: i32) -> (i32, i32) {
    %c0_i32 = arith.constant 0 : i32
    %c0_i32_0 = arith.constant 0 : i32
    %c0_i32_1 = arith.constant 0 : i32
    return %c0_i32, %c0_i32_0 : i32, i32
  }
  func.func @transform_7(%arg0: i32) -> (i32, i32) {
    %c0_i32 = arith.constant 0 : i32
    %c0_i32_0 = arith.constant 0 : i32
    %c0_i32_1 = arith.constant 0 : i32
    return %c0_i32, %c0_i32_0 : i32, i32
  }
}

</mosaic_0001>

<llo_original>
// kernel: _run_pallas.1
$region0: #{_run_pallas.1}
  #allocation0 [shape = 'u32[]', space=smem, size = 0x4, offset = 0x4, fixed_abs, tag = 'smem constant byte address 0x4 - core index']
  #allocation1 [shape = 'u32[144,128]{1,0:T(1,128)}', space=vmem, size = 0x12000, scoped, tag = 'internal scratch']
  %s0 = inlined_call_operand.vmem [shape: f32[16,32], index: 0, kind: input, shape index: {}]
  %s1 = inlined_call_operand.vmem [shape: f32[32,32], index: 1, kind: input, shape index: {}]
  %s2 = inlined_call_operand.vmem [shape: f32[2,32,8], index: 2, kind: input, shape index: {}]
  %s3 = inlined_call_operand.vmem [shape: f32[2,32,16], index: 3, kind: input, shape index: {}]
  %s4 = inlined_call_operand.vmem [shape: f32[4,32,128], index: 4, kind: input, shape index: {}]
  %s5 = inlined_call_operand.hbm [shape: f32[2,64,64], index: 5, kind: input, shape index: {}]
  %s6 = inlined_call_operand.vmem [shape: f32[8,64], index: 6, kind: input, shape index: {}]
  %s7 = inlined_call_operand.hbm [shape: f32[16,32], index: 7, kind: output, shape index: {}]
  %s8 = sld [smem:[#allocation0]]
  $region42: #{_run_pallas.1} parent=0
    _
  %s10 = ssub.s32 1, %s8
  %s11 = scalar_select 0, %s10, %s8
  $region1: #{_run_pallas.1} parent=0
    #allocation2 [shape = 'u8[65536]{0}', space=vmem, size = 0x10000, scoped, tag = 'input window, operand 5, single buffered']
    #allocation3 [shape = 's32[1]{0}', space=sflag, size = 0x4, scoped, tag = 'scoped memory for _run_pallas.1']
    #allocation4 [shape = 's32[1]{0}', space=sflag, size = 0x4, scoped, tag = 'scoped memory for _run_pallas.1']
    #allocation5 [shape = 'u8[8192]{0}', space=vmem, size = 0x2000, scoped, tag = 'output window, operand 0, single buffered']
    %12 = vsyncpa [#allocation3], 0
    %13 = vsyncpa [#allocation4], 0
    // Predicated region
    $region2: #{_run_pallas.1} parent=1 // pred_check
      _
    $region3: #{_run_pallas.1} parent=1 // pred_check_branch
      %15 = sbr.rel (0) target = $region5
    $region4: #{_run_pallas.1} parent=1 // pred_region
      _
    $region5: #{_run_pallas.1} parent=1 // pred_fallthru
      _
    // Predicated region
    $region6: #{_run_pallas.1} parent=1 // pred_check
      _
    $region7: #{_run_pallas.1} parent=1 // pred_check_branch
      %17 = sbr.rel (0) target = $region9
    $region8: #{_run_pallas.1} parent=1 // pred_region
      _
    $region9: #{_run_pallas.1} parent=1 // pred_fallthru
      _
    // Predicated region
    $region10: #{_run_pallas.1} parent=1 // pred_check
      _
    $region11: #{_run_pallas.1} parent=1 // pred_check_branch
      %19 = sbr.rel (0) target = $region13
    $region12: #{_run_pallas.1} parent=1 // pred_region
      _
    $region13: #{_run_pallas.1} parent=1 // pred_fallthru
      _
    // Predicated region
    $region14: #{_run_pallas.1} parent=1 // pred_check
      _
    $region15: #{_run_pallas.1} parent=1 // pred_check_branch
      %21 = sbr.rel (0) target = $region17
    $region16: #{_run_pallas.1} parent=1 // pred_region
      _
    $region17: #{_run_pallas.1} parent=1 // pred_fallthru
      _
    // Predicated region
    $region18: #{_run_pallas.1} parent=1 // pred_check
      _
    $region19: #{_run_pallas.1} parent=1 // pred_check_branch
      %23 = sbr.rel (0) target = $region21
    $region20: #{_run_pallas.1} parent=1 // pred_region
      _
    $region21: #{_run_pallas.1} parent=1 // pred_fallthru
      _
    // Predicated region
    $region22: #{_run_pallas.1} parent=1 // pred_check
      _
    $region23: #{_run_pallas.1} parent=1 // pred_check_branch
      %25 = sbr.rel (0) target = $region25
    $region24: #{_run_pallas.1} parent=1 // pred_region
      %s27 = ssub.s32 2048, 2048
      %28 = vsyncadd [#allocation3], %s27
      %s29 = sshll.u32 [#allocation2], 4
      %s30 = int_to_ptr.vmem [resolvable:$true] %s29
      %35 = dma.hbm_to_vmem [thread:$0]  %s5, 2048, %s30, [#allocation3], 128, 128, 8
    $region25: #{_run_pallas.1} parent=1 // pred_fallthru
      _
    // Predicated region
    $region26: #{_run_pallas.1} parent=1 // pred_check
      _
    $region27: #{_run_pallas.1} parent=1 // pred_check_branch
      %37 = sbr.rel (0) target = $region29
    $region28: #{_run_pallas.1} parent=1 // pred_region
      _
    $region29: #{_run_pallas.1} parent=1 // pred_fallthru
      _
    // Predicated region
    $region30: #{_run_pallas.1} parent=1 // pred_check
      _
    $region31: #{_run_pallas.1} parent=1 // pred_check_branch
      %39 = sbr.rel (0) target = $region33
    $region32: #{_run_pallas.1} parent=1 // pred_region
      %40 = dma.done [#allocation3], 2048
    $region33: #{_run_pallas.1} parent=1 // pred_fallthru
      _
    %v41 = vld [vmem:[%s0] sm:$0xff]
    %v42 = vld [vmem:[%s0 + $0x8] sm:$0xff]
    %v43 = vld [vmem:[%s1] sm:$0xff]
    %v44 = vld [vmem:[%s1 + $0x8] sm:$0xff]
    %v45 = vld [vmem:[%s1 + $0x10] sm:$0xff]
    %v46 = vld [vmem:[%s1 + $0x18] sm:$0xff]
    %v47 = vld [vmem:[%s6] sm:$0xff]
    %v48 = vld [vmem:[%s4] sm:$0xff]
    %v49 = vld [vmem:[%s4 + $0x8] sm:$0xff]
    %v50 = vld [vmem:[%s4 + $0x10] sm:$0xff]
    %v51 = vld [vmem:[%s4 + $0x18] sm:$0xff]
    %s52 = scalar_lea.vmem %s4, 32
    %v53 = vld [vmem:[%s52] sm:$0xff]
    %v54 = vld [vmem:[%s52 + $0x8] sm:$0xff]
    %v55 = vld [vmem:[%s52 + $0x10] sm:$0xff]
    %v56 = vld [vmem:[%s52 + $0x18] sm:$0xff]
    %s57 = scalar_lea.vmem %s4, 64
    %v58 = vld [vmem:[%s57] sm:$0xff]
    %v59 = vld [vmem:[%s57 + $0x8] sm:$0xff]
    %v60 = vld [vmem:[%s57 + $0x10] sm:$0xff]
    %v61 = vld [vmem:[%s57 + $0x18] sm:$0xff]
    %s62 = scalar_lea.vmem %s4, 96
    %v63 = vld [vmem:[%s62] sm:$0xff]
    %v64 = vld [vmem:[%s62 + $0x8] sm:$0xff]
    %v65 = vld [vmem:[%s62 + $0x10] sm:$0xff]
    %v66 = vld [vmem:[%s62 + $0x18] sm:$0xff]
    %v67 = vld [vmem:[#allocation2] sm:$0xff]
    %v68 = vld [vmem:[#allocation2 + $0x8] sm:$0xff]
    %v69 = vld [vmem:[#allocation2 + $0x10] sm:$0xff]
    %v70 = vld [vmem:[#allocation2 + $0x18] sm:$0xff]
    %s71 = scalar_lea.vmem [#allocation2], 64
    %v72 = vld [vmem:[%s71] sm:$0xff]
    %v73 = vld [vmem:[%s71 + $0x8] sm:$0xff]
    %v74 = vld [vmem:[%s71 + $0x10] sm:$0xff]
    %v75 = vld [vmem:[%s71 + $0x18] sm:$0xff]
    %v76 = vld [vmem:[%s71 + $0x20] sm:$0xff]
    %v77 = vld [vmem:[%s71 + $0x28] sm:$0xff]
    %v78 = vld [vmem:[%s71 + $0x30] sm:$0xff]
    %v79 = vld [vmem:[%s71 + $0x38] sm:$0xff]
    %vm80 = vcmask 261120
    %v82 = vsel %vm80, %v41, 0
    %v85 = vsel %vm80, %v42, 0
    %87 = vmatprep.subr.mxu0 0.0
    %88 = vmatpush1.msra.mxu0 %v48
    %89 = vmatprep.subr.mxu0 0.0
    %90 = vmatpush1.msra.mxu0 %v49
    %91 = vmatprep.subr.mxu0 0.0
    %92 = vmatpush1.msra.mxu0 %v50
    %93 = vmatprep.subr.mxu0 0.0
    %94 = vmatpush1.msra.mxu0 %v51
    %95 = vmatprep.subr.mxu0 0.0
    %96 = vmatpush1.msra.mxu0 0.0
    %97 = vmatprep.subr.mxu0 0.0
    %98 = vmatpush1.msra.mxu0 0.0
    %99 = vmatprep.subr.mxu0 0.0
    %100 = vmatpush1.msra.mxu0 0.0
    %101 = vmatprep.subr.mxu0 0.0
    %102 = vmatpush1.msra.mxu0 0.0
    %103 = vmatprep.subr.mxu0 0.0
    %104 = vmatpush1.msra.mxu0 0.0
    %105 = vmatprep.subr.mxu0 0.0
    %106 = vmatpush1.msra.mxu0 0.0
    %107 = vmatprep.subr.mxu0 0.0
    %108 = vmatpush1.msra.mxu0 0.0
    %109 = vmatprep.subr.mxu0 0.0
    %110 = vmatpush1.msra.mxu0 0.0
    %111 = vmatprep.subr.mxu0 0.0
    %112 = vmatpush1.msra.mxu0 0.0
    %113 = vmatprep.subr.mxu0 0.0
    %114 = vmatpush1.msra.mxu0 0.0
    %115 = vmatprep.subr.mxu0 0.0
    %116 = vmatpush1.msra.mxu0 0.0
    %117 = vmatprep.subr.mxu0 0.0
    %118 = vmatpush1.msra.mxu0 0.0
    %119 = vmatprep.subr.mxu0 0.0
    %120 = vmatpush1.msra.mxu0 0.0
    %121 = vmatprep.subr.mxu0 0.0
    %122 = vmatpush1.msra.mxu0 0.0
    %123 = vmatprep.subr.mxu0 0.0
    %124 = vmatpush1.msra.mxu0 0.0
    %125 = vmatprep.subr.mxu0 0.0
    %126 = vmatpush1.msra.mxu0 0.0
    %127 = vmatprep.subr.mxu0 0.0
    %128 = vmatpush1.msra.mxu0 0.0
    %129 = vmatprep.subr.mxu0 0.0
    %130 = vmatpush1.msra.mxu0 0.0
    %131 = vmatprep.subr.mxu0 0.0
    %132 = vmatpush1.msra.mxu0 0.0
    %133 = vmatprep.subr.mxu0 0.0
    %134 = vmatpush1.msra.mxu0 0.0
    %135 = vmatprep.subr.mxu0 0.0
    %136 = vmatpush1.msra.mxu0 0.0
    %137 = vmatprep.subr.mxu0 0.0
    %138 = vmatpush1.msra.mxu0 0.0
    %139 = vmatprep.subr.mxu0 0.0
    %140 = vmatpush1.msra.mxu0 0.0
    %141 = vmatprep.subr.mxu0 0.0
    %142 = vmatpush1.msra.mxu0 0.0
    %143 = vmatprep.subr.mxu0 0.0
    %144 = vmatpush1.msra.mxu0 0.0
    %145 = vmatprep.subr.mxu0 0.0
    %146 = vmatpush1.msra.mxu0 0.0
    %147 = vmatprep.subr.mxu0 0.0
    %148 = vmatpush1.msra.mxu0 0.0
    %149 = vmatprep.subr.mxu0 0.0
    %150 = vmatpush1.msra.mxu0 0.0
    %151 = vmatprep.mubr.f32.mxu0 0.0
    %152 = vmatmul.mubr.f32.gmra.mrb[0].mxu0 %v82
    %v153 = vpop.f32.mrb[0].mxu0
    %v154 = vadd.f32 0.0, %v153
    %v155 = vpop.f32.mrb[0].mxu0
    %156 = vmatprep.mubr.f32.mxu0 0.0
    %157 = vmatmul.mubr.f32.gmra.mrb[0].mxu0 %v85
    %v158 = vpop.f32.mrb[0].mxu0
    %v159 = vadd.f32 0.0, %v158
    %v160 = vpop.f32.mrb[0].mxu0
    %161 = vdwg.mxu0
    %162 = vmatprep.subr.mxu0 0.0
    %163 = vmatpush1.msra.mxu0 %v53
    %164 = vmatprep.subr.mxu0 0.0
    %165 = vmatpush1.msra.mxu0 %v54
    %166 = vmatprep.subr.mxu0 0.0
    %167 = vmatpush1.msra.mxu0 %v55
    %168 = vmatprep.subr.mxu0 0.0
    %169 = vmatpush1.msra.mxu0 %v56
    %170 = vmatprep.subr.mxu0 0.0
    %171 = vmatpush1.msra.mxu0 0.0
    %172 = vmatprep.subr.mxu0 0.0
    %173 = vmatpush1.msra.mxu0 0.0
    %174 = vmatprep.subr.mxu0 0.0
    %175 = vmatpush1.msra.mxu0 0.0
    %176 = vmatprep.subr.mxu0 0.0
    %177 = vmatpush1.msra.mxu0 0.0
    %178 = vmatprep.subr.mxu0 0.0
    %179 = vmatpush1.msra.mxu0 0.0
    %180 = vmatprep.subr.mxu0 0.0
    %181 = vmatpush1.msra.mxu0 0.0
    %182 = vmatprep.subr.mxu0 0.0
    %183 = vmatpush1.msra.mxu0 0.0
    %184 = vmatprep.subr.mxu0 0.0
    %185 = vmatpush1.msra.mxu0 0.0
    %186 = vmatprep.subr.mxu0 0.0
    %187 = vmatpush1.msra.mxu0 0.0
    %188 = vmatprep.subr.mxu0 0.0
    %189 = vmatpush1.msra.mxu0 0.0
    %190 = vmatprep.subr.mxu0 0.0
    %191 = vmatpush1.msra.mxu0 0.0
    %192 = vmatprep.subr.mxu0 0.0
    %193 = vmatpush1.msra.mxu0 0.0
    %194 = vmatprep.subr.mxu0 0.0
    %195 = vmatpush1.msra.mxu0 0.0
    %196 = vmatprep.subr.mxu0 0.0
    %197 = vmatpush1.msra.mxu0 0.0
    %198 = vmatprep.subr.mxu0 0.0
    %199 = vmatpush1.msra.mxu0 0.0
    %200 = vmatprep.subr.mxu0 0.0
    %201 = vmatpush1.msra.mxu0 0.0
    %202 = vmatprep.subr.mxu0 0.0
    %203 = vmatpush1.msra.mxu0 0.0
    %204 = vmatprep.subr.mxu0 0.0
    %205 = vmatpush1.msra.mxu0 0.0
    %206 = vmatprep.subr.mxu0 0.0
    %207 = vmatpush1.msra.mxu0 0.0
    %208 = vmatprep.subr.mxu0 0.0
    %209 = vmatpush1.msra.mxu0 0.0
    %210 = vmatprep.subr.mxu0 0.0
    %211 = vmatpush1.msra.mxu0 0.0
    %212 = vmatprep.subr.mxu0 0.0
    %213 = vmatpush1.msra.mxu0 0.0
    %214 = vmatprep.subr.mxu0 0.0
    %215 = vmatpush1.msra.mxu0 0.0
    %216 = vmatprep.subr.mxu0 0.0
    %217 = vmatpush1.msra.mxu0 0.0
    %218 = vmatprep.subr.mxu0 0.0
    %219 = vmatpush1.msra.mxu0 0.0
    %220 = vmatprep.subr.mxu0 0.0
    %221 = vmatpush1.msra.mxu0 0.0
    %222 = vmatprep.subr.mxu0 0.0
    %223 = vmatpush1.msra.mxu0 0.0
    %224 = vmatprep.subr.mxu0 0.0
    %225 = vmatpush1.msra.mxu0 0.0
    %226 = vmatprep.mubr.f32.mxu0 0.0
    %227 = vmatmul.mubr.f32.gmra.mrb[0].mxu0 %v82
    %v228 = vpop.f32.mrb[0].mxu0
    %v229 = vadd.f32 0.0, %v228
    %v230 = vpop.f32.mrb[0].mxu0
    %231 = vmatprep.mubr.f32.mxu0 0.0
    %232 = vmatmul.mubr.f32.gmra.mrb[0].mxu0 %v85
    %v233 = vpop.f32.mrb[0].mxu0
    %v234 = vadd.f32 0.0, %v233
    %v235 = vpop.f32.mrb[0].mxu0
    %236 = vdwg.mxu0
    %v237 = vld [vmem:[%s2] sm:$0xff]
    %v238 = vld [vmem:[%s2 + $0x8] sm:$0xff]
    %v239 = vld [vmem:[%s2 + $0x10] sm:$0xff]
    %v240 = vld [vmem:[%s2 + $0x18] sm:$0xff]
    %242 = vrot.lane.b32.xlu0 %v154, 96
    %v243 = vpop.permute.xlu0 %242
    %244 = vrot.lane.b32.xlu0 %v154, 64
    %v245 = vpop.permute.xlu0 %244
    %246 = vrot.lane.b32.xlu0 %v154, 32
    %v247 = vpop.permute.xlu0 %246
    %v248 = vsel %vm80, %v154, 0
    %v250 = vsel %vm80, %v243, 0
    %v252 = vsel %vm80, %v245, 0
    %v254 = vsel %vm80, %v247, 0
    %256 = vmatprep.subr.mxu0 0.0
    %257 = vmatpush1.xpose.msra.mxu0 %v82
    %258 = vmatprep.subr.mxu0 0.0
    %259 = vmatpush1.xpose.msra.mxu0 0.0
    %260 = vmatprep.subr.mxu0 0.0
    %261 = vmatpush1.xpose.msra.mxu0 0.0
    %262 = vmatprep.subr.mxu0 0.0
    %263 = vmatpush1.xpose.msra.mxu0 0.0
    %264 = vmatprep.subr.mxu0 0.0
    %265 = vmatpush1.xpose.msra.mxu0 0.0
    %266 = vmatprep.subr.mxu0 0.0
    %267 = vmatpush1.xpose.msra.mxu0 0.0
    %268 = vmatprep.subr.mxu0 0.0
    %269 = vmatpush1.xpose.msra.mxu0 0.0
    %270 = vmatprep.subr.mxu0 0.0
    %271 = vmatpush1.xpose.msra.mxu0 0.0
    %272 = vmatprep.subr.mxu0 0.0
    %273 = vmatpush1.xpose.msra.mxu0 0.0
    %274 = vmatprep.subr.mxu0 0.0
    %275 = vmatpush1.xpose.msra.mxu0 0.0
    %276 = vmatprep.subr.mxu0 0.0
    %277 = vmatpush1.xpose.msra.mxu0 0.0
    %278 = vmatprep.subr.mxu0 0.0
    %279 = vmatpush1.xpose.msra.mxu0 0.0
    %280 = vmatprep.subr.mxu0 0.0
    %281 = vmatpush1.xpose.msra.mxu0 0.0
    %282 = vmatprep.subr.mxu0 0.0
    %283 = vmatpush1.xpose.msra.mxu0 0.0
    %284 = vmatprep.subr.mxu0 0.0
    %285 = vmatpush1.xpose.msra.mxu0 0.0
    %286 = vmatprep.subr.mxu0 0.0
    %287 = vmatpush1.xpose.msra.mxu0 0.0
    %288 = vmatprep.subr.mxu0 0.0
    %289 = vmatpush1.xpose.msra.mxu0 0.0
    %290 = vmatprep.subr.mxu0 0.0
    %291 = vmatpush1.xpose.msra.mxu0 0.0
    %292 = vmatprep.subr.mxu0 0.0
    %293 = vmatpush1.xpose.msra.mxu0 0.0
    %294 = vmatprep.subr.mxu0 0.0
    %295 = vmatpush1.xpose.msra.mxu0 0.0
    %296 = vmatprep.subr.mxu0 0.0
    %297 = vmatpush1.xpose.msra.mxu0 0.0
    %298 = vmatprep.subr.mxu0 0.0
    %299 = vmatpush1.xpose.msra.mxu0 0.0
    %300 = vmatprep.subr.mxu0 0.0
    %301 = vmatpush1.xpose.msra.mxu0 0.0
    %302 = vmatprep.subr.mxu0 0.0
    %303 = vmatpush1.xpose.msra.mxu0 0.0
    %304 = vmatprep.subr.mxu0 0.0
    %305 = vmatpush1.xpose.msra.mxu0 0.0
    %306 = vmatprep.subr.mxu0 0.0
    %307 = vmatpush1.xpose.msra.mxu0 0.0
    %308 = vmatprep.subr.mxu0 0.0
    %309 = vmatpush1.xpose.msra.mxu0 0.0
    %310 = vmatprep.subr.mxu0 0.0
    %311 = vmatpush1.xpose.msra.mxu0 0.0
    %312 = vmatprep.subr.mxu0 0.0
    %313 = vmatpush1.xpose.msra.mxu0 0.0
    %314 = vmatprep.subr.mxu0 0.0
    %315 = vmatpush1.xpose.msra.mxu0 0.0
    %316 = vmatprep.subr.mxu0 0.0
    %317 = vmatpush1.xpose.msra.mxu0 0.0
    %318 = vmatprep.subr.mxu0 0.0
    %319 = vmatpush1.xpose.msra.mxu0 0.0
    %320 = vmatprep.mubr.f32.mxu0 0.0
    %321 = vmatmul.mubr.f32.gmra.mrb[0].mxu0 %v248
    %v322 = vpop.f32.mrb[0].mxu0
    %v323 = vadd.f32 %v237, %v322
    %v324 = vpop.f32.mrb[0].mxu0
    %325 = vmatprep.mubr.f32.mxu0 0.0
    %326 = vmatmul.mubr.f32.gmra.mrb[0].mxu0 %v250
    %v327 = vpop.f32.mrb[0].mxu0
    %v328 = vadd.f32 %v238, %v327
    %v329 = vpop.f32.mrb[0].mxu0
    %330 = vmatprep.mubr.f32.mxu0 0.0
    %331 = vmatmul.mubr.f32.gmra.mrb[0].mxu0 %v252
    %v332 = vpop.f32.mrb[0].mxu0
    %v333 = vadd.f32 %v239, %v332
    %v334 = vpop.f32.mrb[0].mxu0
    %335 = vmatprep.mubr.f32.mxu0 0.0
    %336 = vmatmul.mubr.f32.gmra.mrb[0].mxu0 %v254
    %v337 = vpop.f32.mrb[0].mxu0
    %v338 = vadd.f32 %v240, %v337
    %v339 = vpop.f32.mrb[0].mxu0
    %340 = vdwg.mxu0
    %vm341 = vcmask 64512
    %v342 = vsel %vm341, %v323, -inf
    %343 = vmax.xlane.f32.xlu0 %v342
    %v344 = vpop.xlane.xlu0 %343
    %v345 = vsel %vm341, %v328, -inf
    %346 = vmax.xlane.f32.xlu0 %v345
    %v347 = vpop.xlane.xlu0 %346
    %v348 = vsel %vm341, %v333, -inf
    %349 = vmax.xlane.f32.xlu0 %v348
    %v350 = vpop.xlane.xlu0 %349
    %v351 = vsel %vm341, %v338, -inf
    %352 = vmax.xlane.f32.xlu0 %v351
    %v353 = vpop.xlane.xlu0 %352
    %v354 = vsub.f32 %v323, %v344
    %v355 = vsub.f32 %v328, %v347
    %v356 = vsub.f32 %v333, %v350
    %v357 = vsub.f32 %v338, %v353
    %v358 = vmul.f32 %v354, 1.442695
    %v359 = vpow.pop %v358
    %v360 = vmul.f32 %v355, 1.442695
    %v361 = vpow.pop %v360
    %v362 = vmul.f32 %v356, 1.442695
    %v363 = vpow.pop %v362
    %v364 = vmul.f32 %v357, 1.442695
    %v365 = vpow.pop %v364
    %v366 = vsel %vm341, %v359, 0.0
    %367 = vadd.xlane.f32.xlu0 %v366
    %v368 = vpop.xlane.xlu0 %367
    %v369 = vsel %vm341, %v361, 0.0
    %370 = vadd.xlane.f32.xlu0 %v369
    %v371 = vpop.xlane.xlu0 %370
    %v372 = vsel %vm341, %v363, 0.0
    %373 = vadd.xlane.f32.xlu0 %v372
    %v374 = vpop.xlane.xlu0 %373
    %v375 = vsel %vm341, %v365, 0.0
    %376 = vadd.xlane.f32.xlu0 %v375
    %v377 = vpop.xlane.xlu0 %376
    %v378 = vrcp.pop %v368
    %v379 = vrcp.pop %v371
    %v380 = vrcp.pop %v374
    %v381 = vrcp.pop %v377
    %v382 = vmul.f32 %v359, %v378
    %v383 = vmul.f32 %v361, %v379
    %v384 = vmul.f32 %v363, %v380
    %v385 = vmul.f32 %v365, %v381
    %v387 = vsel %vm341, %v382, 0
    %v390 = vsel %vm341, %v383, 0
    %v393 = vsel %vm341, %v384, 0
    %v396 = vsel %vm341, %v385, 0
    %398 = vmatprep.subr.mxu0 0.0
    %399 = vmatpush1.msra.mxu0 %v229
    %400 = vmatprep.subr.mxu0 0.0
    %401 = vmatpush1.msra.mxu0 0.0
    %402 = vmatprep.subr.mxu0 0.0
    %403 = vmatpush1.msra.mxu0 0.0
    %404 = vmatprep.subr.mxu0 0.0
    %405 = vmatpush1.msra.mxu0 0.0
    %406 = vmatprep.subr.mxu0 0.0
    %407 = vmatpush1.msra.mxu0 0.0
    %408 = vmatprep.subr.mxu0 0.0
    %409 = vmatpush1.msra.mxu0 0.0
    %410 = vmatprep.subr.mxu0 0.0
    %411 = vmatpush1.msra.mxu0 0.0
    %412 = vmatprep.subr.mxu0 0.0
    %413 = vmatpush1.msra.mxu0 0.0
    %414 = vmatprep.subr.mxu0 0.0
    %415 = vmatpush1.msra.mxu0 0.0
    %416 = vmatprep.subr.mxu0 0.0
    %417 = vmatpush1.msra.mxu0 0.0
    %418 = vmatprep.subr.mxu0 0.0
    %419 = vmatpush1.msra.mxu0 0.0
    %420 = vmatprep.subr.mxu0 0.0
    %421 = vmatpush1.msra.mxu0 0.0
    %422 = vmatprep.subr.mxu0 0.0
    %423 = vmatpush1.msra.mxu0 0.0
    %424 = vmatprep.subr.mxu0 0.0
    %425 = vmatpush1.msra.mxu0 0.0
    %426 = vmatprep.subr.mxu0 0.0
    %427 = vmatpush1.msra.mxu0 0.0
    %428 = vmatprep.subr.mxu0 0.0
    %429 = vmatpush1.msra.mxu0 0.0
    %430 = vmatprep.subr.mxu0 0.0
    %431 = vmatpush1.msra.mxu0 0.0
    %432 = vmatprep.subr.mxu0 0.0
    %433 = vmatpush1.msra.mxu0 0.0
    %434 = vmatprep.subr.mxu0 0.0
    %435 = vmatpush1.msra.mxu0 0.0
    %436 = vmatprep.subr.mxu0 0.0
    %437 = vmatpush1.msra.mxu0 0.0
    %438 = vmatprep.subr.mxu0 0.0
    %439 = vmatpush1.msra.mxu0 0.0
    %440 = vmatprep.subr.mxu0 0.0
    %441 = vmatpush1.msra.mxu0 0.0
    %442 = vmatprep.subr.mxu0 0.0
    %443 = vmatpush1.msra.mxu0 0.0
    %444 = vmatprep.subr.mxu0 0.0
    %445 = vmatpush1.msra.mxu0 0.0
    %446 = vmatprep.subr.mxu0 0.0
    %447 = vmatpush1.msra.mxu0 0.0
    %448 = vmatprep.subr.mxu0 0.0
    %449 = vmatpush1.msra.mxu0 0.0
    %450 = vmatprep.subr.mxu0 0.0
    %451 = vmatpush1.msra.mxu0 0.0
    %452 = vmatprep.subr.mxu0 0.0
    %453 = vmatpush1.msra.mxu0 0.0
    %454 = vmatprep.subr.mxu0 0.0
    %455 = vmatpush1.msra.mxu0 0.0
    %456 = vmatprep.subr.mxu0 0.0
    %457 = vmatpush1.msra.mxu0 0.0
    %458 = vmatprep.subr.mxu0 0.0
    %459 = vmatpush1.msra.mxu0 0.0
    %460 = vmatprep.subr.mxu0 0.0
    %461 = vmatpush1.msra.mxu0 0.0
    %462 = vmatprep.mubr.f32.mxu0 0.0
    %463 = vmatmul.mubr.f32.gmra.mrb[0].mxu0 %v387
    %v464 = vpop.f32.mrb[0].mxu0
    %v465 = vadd.f32 0.0, %v464
    %v466 = vpop.f32.mrb[0].mxu0
    %467 = vmatprep.mubr.f32.mxu0 0.0
    %468 = vmatmul.mubr.f32.gmra.mrb[0].mxu0 %v390
    %v469 = vpop.f32.mrb[0].mxu0
    %v470 = vadd.f32 0.0, %v469
    %v471 = vpop.f32.mrb[0].mxu0
    %472 = vmatprep.mubr.f32.mxu0 0.0
    %473 = vmatmul.mubr.f32.gmra.mrb[0].mxu0 %v393
    %v474 = vpop.f32.mrb[0].mxu0
    %v475 = vadd.f32 0.0, %v474
    %v476 = vpop.f32.mrb[0].mxu0
    %477 = vmatprep.mubr.f32.mxu0 0.0
    %478 = vmatmul.mubr.f32.gmra.mrb[0].mxu0 %v396
    %v479 = vpop.f32.mrb[0].mxu0
    %v480 = vadd.f32 0.0, %v479
    %v481 = vpop.f32.mrb[0].mxu0
    %482 = vdwg.mxu0
    %484 = vrot.lane.b32.xlu0 %v470, 96
    %v485 = vpop.permute.xlu0 %484
    %v487 = vadd.f32 %v465, %v485
    %489 = vrot.lane.b32.xlu0 %v475, 64
    %v490 = vpop.permute.xlu0 %489
    %v492 = vadd.f32 %v487, %v490
    %494 = vrot.lane.b32.xlu0 %v480, 32
    %v495 = vpop.permute.xlu0 %494
    %v497 = vadd.f32 %v492, %v495
    %s498 = scalar_lea.vmem %s2, 32
    %v499 = vld [vmem:[%s498] sm:$0xff]
    %v500 = vld [vmem:[%s498 + $0x8] sm:$0xff]
    %v501 = vld [vmem:[%s498 + $0x10] sm:$0xff]
    %v502 = vld [vmem:[%s498 + $0x18] sm:$0xff]
    %504 = vrot.lane.b32.xlu0 %v159, 96
    %v505 = vpop.permute.xlu0 %504
    %506 = vrot.lane.b32.xlu0 %v159, 64
    %v507 = vpop.permute.xlu0 %506
    %508 = vrot.lane.b32.xlu0 %v159, 32
    %v509 = vpop.permute.xlu0 %508
    %v510 = vsel %vm80, %v159, 0
    %v512 = vsel %vm80, %v505, 0
    %v514 = vsel %vm80, %v507, 0
    %v516 = vsel %vm80, %v509, 0
    %518 = vmatprep.subr.mxu0 0.0
    %519 = vmatpush1.xpose.msra.mxu0 %v85
    %520 = vmatprep.subr.mxu0 0.0
    %521 = vmatpush1.xpose.msra.mxu0 0.0
    %522 = vmatprep.subr.mxu0 0.0
    %523 = vmatpush1.xpose.msra.mxu0 0.0
    %524 = vmatprep.subr.mxu0 0.0
    %525 = vmatpush1.xpose.msra.mxu0 0.0
    %526 = vmatprep.subr.mxu0 0.0
    %527 = vmatpush1.xpose.msra.mxu0 0.0
    %528 = vmatprep.subr.mxu0 0.0
    %529 = vmatpush1.xpose.msra.mxu0 0.0
    %530 = vmatprep.subr.mxu0 0.0
    %531 = vmatpush1.xpose.msra.mxu0 0.0
    %532 = vmatprep.subr.mxu0 0.0
    %533 = vmatpush1.xpose.msra.mxu0 0.0
    %534 = vmatprep.subr.mxu0 0.0
    %535 = vmatpush1.xpose.msra.mxu0 0.0
    %536 = vmatprep.subr.mxu0 0.0
    %537 = vmatpush1.xpose.msra.mxu0 0.0
    %538 = vmatprep.subr.mxu0 0.0
    %539 = vmatpush1.xpose.msra.mxu0 0.0
    %540 = vmatprep.subr.mxu0 0.0
    %541 = vmatpush1.xpose.msra.mxu0 0.0
    %542 = vmatprep.subr.mxu0 0.0
    %543 = vmatpush1.xpose.msra.mxu0 0.0
    %544 = vmatprep.subr.mxu0 0.0
    %545 = vmatpush1.xpose.msra.mxu0 0.0
    %546 = vmatprep.subr.mxu0 0.0
    %547 = vmatpush1.xpose.msra.mxu0 0.0
    %548 = vmatprep.subr.mxu0 0.0
    %549 = vmatpush1.xpose.msra.mxu0 0.0
    %550 = vmatprep.subr.mxu0 0.0
    %551 = vmatpush1.xpose.msra.mxu0 0.0
    %552 = vmatprep.subr.mxu0 0.0
    %553 = vmatpush1.xpose.msra.mxu0 0.0
    %554 = vmatprep.subr.mxu0 0.0
    %555 = vmatpush1.xpose.msra.mxu0 0.0
    %556 = vmatprep.subr.mxu0 0.0
    %557 = vmatpush1.xpose.msra.mxu0 0.0
    %558 = vmatprep.subr.mxu0 0.0
    %559 = vmatpush1.xpose.msra.mxu0 0.0
    %560 = vmatprep.subr.mxu0 0.0
    %561 = vmatpush1.xpose.msra.mxu0 0.0
    %562 = vmatprep.subr.mxu0 0.0
    %563 = vmatpush1.xpose.msra.mxu0 0.0
    %564 = vmatprep.subr.mxu0 0.0
    %565 = vmatpush1.xpose.msra.mxu0 0.0
    %566 = vmatprep.subr.mxu0 0.0
    %567 = vmatpush1.xpose.msra.mxu0 0.0
    %568 = vmatprep.subr.mxu0 0.0
    %569 = vmatpush1.xpose.msra.mxu0 0.0
    %570 = vmatprep.subr.mxu0 0.0
    %571 = vmatpush1.xpose.msra.mxu0 0.0
    %572 = vmatprep.subr.mxu0 0.0
    %573 = vmatpush1.xpose.msra.mxu0 0.0
    %574 = vmatprep.subr.mxu0 0.0
    %575 = vmatpush1.xpose.msra.mxu0 0.0
    %576 = vmatprep.subr.mxu0 0.0
    %577 = vmatpush1.xpose.msra.mxu0 0.0
    %578 = vmatprep.subr.mxu0 0.0
    %579 = vmatpush1.xpose.msra.mxu0 0.0
    %580 = vmatprep.subr.mxu0 0.0
    %581 = vmatpush1.xpose.msra.mxu0 0.0
    %582 = vmatprep.mubr.f32.mxu0 0.0
    %583 = vmatmul.mubr.f32.gmra.mrb[0].mxu0 %v510
    %v584 = vpop.f32.mrb[0].mxu0
    %v585 = vadd.f32 %v499, %v584
    %v586 = vpop.f32.mrb[0].mxu0
    %587 = vmatprep.mubr.f32.mxu0 0.0
    %588 = vmatmul.mubr.f32.gmra.mrb[0].mxu0 %v512
    %v589 = vpop.f32.mrb[0].mxu0
    %v590 = vadd.f32 %v500, %v589
    %v591 = vpop.f32.mrb[0].mxu0
    %592 = vmatprep.mubr.f32.mxu0 0.0
    %593 = vmatmul.mubr.f32.gmra.mrb[0].mxu0 %v514
    %v594 = vpop.f32.mrb[0].mxu0
    %v595 = vadd.f32 %v501, %v594
    %v596 = vpop.f32.mrb[0].mxu0
    %597 = vmatprep.mubr.f32.mxu0 0.0
    %598 = vmatmul.mubr.f32.gmra.mrb[0].mxu0 %v516
    %v599 = vpop.f32.mrb[0].mxu0
    %v600 = vadd.f32 %v502, %v599
    %v601 = vpop.f32.mrb[0].mxu0
    %602 = vdwg.mxu0
    %v603 = vsel %vm341, %v585, -inf
    %604 = vmax.xlane.f32.xlu0 %v603
    %v605 = vpop.xlane.xlu0 %604
    %v606 = vsel %vm341, %v590, -inf
    %607 = vmax.xlane.f32.xlu0 %v606
    %v608 = vpop.xlane.xlu0 %607
    %v609 = vsel %vm341, %v595, -inf
    %610 = vmax.xlane.f32.xlu0 %v609
    %v611 = vpop.xlane.xlu0 %610
    %v612 = vsel %vm341, %v600, -inf
    %613 = vmax.xlane.f32.xlu0 %v612
    %v614 = vpop.xlane.xlu0 %613
    %v615 = vsub.f32 %v585, %v605
    %v616 = vsub.f32 %v590, %v608
    %v617 = vsub.f32 %v595, %v611
    %v618 = vsub.f32 %v600, %v614
    %v619 = vmul.f32 %v615, 1.442695
    %v620 = vpow.pop %v619
    %v621 = vmul.f32 %v616, 1.442695
    %v622 = vpow.pop %v621
    %v623 = vmul.f32 %v617, 1.442695
    %v624 = vpow.pop %v623
    %v625 = vmul.f32 %v618, 1.442695
    %v626 = vpow.pop %v625
    %v627 = vsel %vm341, %v620, 0.0
    %628 = vadd.xlane.f32.xlu0 %v627
    %v629 = vpop.xlane.xlu0 %628
    %v630 = vsel %vm341, %v622, 0.0
    %631 = vadd.xlane.f32.xlu0 %v630
    %v632 = vpop.xlane.xlu0 %631
    %v633 = vsel %vm341, %v624, 0.0
    %634 = vadd.xlane.f32.xlu0 %v633
    %v635 = vpop.xlane.xlu0 %634
    %v636 = vsel %vm341, %v626, 0.0
    %637 = vadd.xlane.f32.xlu0 %v636
    %v638 = vpop.xlane.xlu0 %637
    %v639 = vrcp.pop %v629
    %v640 = vrcp.pop %v632
    %v641 = vrcp.pop %v635
    %v642 = vrcp.pop %v638
    %v643 = vmul.f32 %v620, %v639
    %v644 = vmul.f32 %v622, %v640
    %v645 = vmul.f32 %v624, %v641
    %v646 = vmul.f32 %v626, %v642
    %v648 = vsel %vm341, %v643, 0
    %v651 = vsel %vm341, %v644, 0
    %v654 = vsel %vm341, %v645, 0
    %v657 = vsel %vm341, %v646, 0
    %659 = vmatprep.subr.mxu0 0.0
    %660 = vmatpush1.msra.mxu0 %v234
    %661 = vmatprep.subr.mxu0 0.0
    %662 = vmatpush1.msra.mxu0 0.0
    %663 = vmatprep.subr.mxu0 0.0
    %664 = vmatpush1.msra.mxu0 0.0
    %665 = vmatprep.subr.mxu0 0.0
    %666 = vmatpush1.msra.mxu0 0.0
    %667 = vmatprep.subr.mxu0 0.0
    %668 = vmatpush1.msra.mxu0 0.0
    %669 = vmatprep.subr.mxu0 0.0
    %670 = vmatpush1.msra.mxu0 0.0
    %671 = vmatprep.subr.mxu0 0.0
    %672 = vmatpush1.msra.mxu0 0.0
    %673 = vmatprep.subr.mxu0 0.0
    %674 = vmatpush1.msra.mxu0 0.0
    %675 = vmatprep.subr.mxu0 0.0
    %676 = vmatpush1.msra.mxu0 0.0
    %677 = vmatprep.subr.mxu0 0.0
    %678 = vmatpush1.msra.mxu0 0.0
    %679 = vmatprep.subr.mxu0 0.0
    %680 = vmatpush1.msra.mxu0 0.0
    %681 = vmatprep.subr.mxu0 0.0
    %682 = vmatpush1.msra.mxu0 0.0
    %683 = vmatprep.subr.mxu0 0.0
    %684 = vmatpush1.msra.mxu0 0.0
    %685 = vmatprep.subr.mxu0 0.0
    %686 = vmatpush1.msra.mxu0 0.0
    %687 = vmatprep.subr.mxu0 0.0
    %688 = vmatpush1.msra.mxu0 0.0
    %689 = vmatprep.subr.mxu0 0.0
    %690 = vmatpush1.msra.mxu0 0.0
    %691 = vmatprep.subr.mxu0 0.0
    %692 = vmatpush1.msra.mxu0 0.0
    %693 = vmatprep.subr.mxu0 0.0
    %694 = vmatpush1.msra.mxu0 0.0
    %695 = vmatprep.subr.mxu0 0.0
    %696 = vmatpush1.msra.mxu0 0.0
    %697 = vmatprep.subr.mxu0 0.0
    %698 = vmatpush1.msra.mxu0 0.0
    %699 = vmatprep.subr.mxu0 0.0
    %700 = vmatpush1.msra.mxu0 0.0
    %701 = vmatprep.subr.mxu0 0.0
    %702 = vmatpush1.msra.mxu0 0.0
    %703 = vmatprep.subr.mxu0 0.0
    %704 = vmatpush1.msra.mxu0 0.0
    %705 = vmatprep.subr.mxu0 0.0
    %706 = vmatpush1.msra.mxu0 0.0
    %707 = vmatprep.subr.mxu0 0.0
    %708 = vmatpush1.msra.mxu0 0.0
    %709 = vmatprep.subr.mxu0 0.0
    %710 = vmatpush1.msra.mxu0 0.0
    %711 = vmatprep.subr.mxu0 0.0
    %712 = vmatpush1.msra.mxu0 0.0
    %713 = vmatprep.subr.mxu0 0.0
    %714 = vmatpush1.msra.mxu0 0.0
    %715 = vmatprep.subr.mxu0 0.0
    %716 = vmatpush1.msra.mxu0 0.0
    %717 = vmatprep.subr.mxu0 0.0
    %718 = vmatpush1.msra.mxu0 0.0
    %719 = vmatprep.subr.mxu0 0.0
    %720 = vmatpush1.msra.mxu0 0.0
    %721 = vmatprep.subr.mxu0 0.0
    %722 = vmatpush1.msra.mxu0 0.0
    %723 = vmatprep.mubr.f32.mxu0 0.0
    %724 = vmatmul.mubr.f32.gmra.mrb[0].mxu0 %v648
    %v725 = vpop.f32.mrb[0].mxu0
    %v726 = vadd.f32 0.0, %v725
    %v727 = vpop.f32.mrb[0].mxu0
    %728 = vmatprep.mubr.f32.mxu0 0.0
    %729 = vmatmul.mubr.f32.gmra.mrb[0].mxu0 %v651
    %v730 = vpop.f32.mrb[0].mxu0
    %v731 = vadd.f32 0.0, %v730
    %v732 = vpop.f32.mrb[0].mxu0
    %733 = vmatprep.mubr.f32.mxu0 0.0
    %734 = vmatmul.mubr.f32.gmra.mrb[0].mxu0 %v654
    %v735 = vpop.f32.mrb[0].mxu0
    %v736 = vadd.f32 0.0, %v735
    %v737 = vpop.f32.mrb[0].mxu0
    %738 = vmatprep.mubr.f32.mxu0 0.0
    %739 = vmatmul.mubr.f32.gmra.mrb[0].mxu0 %v657
    %v740 = vpop.f32.mrb[0].mxu0
    %v741 = vadd.f32 0.0, %v740
    %v742 = vpop.f32.mrb[0].mxu0
    %743 = vdwg.mxu0
    %745 = vrot.lane.b32.xlu0 %v731, 96
    %v746 = vpop.permute.xlu0 %745
    %v748 = vadd.f32 %v726, %v746
    %750 = vrot.lane.b32.xlu0 %v736, 64
    %v751 = vpop.permute.xlu0 %750
    %v753 = vadd.f32 %v748, %v751
    %755 = vrot.lane.b32.xlu0 %v741, 32
    %v756 = vpop.permute.xlu0 %755
    %v758 = vadd.f32 %v753, %v756
    %v759 = vadd.f32 %v41, %v497
    %v760 = vadd.f32 %v42, %v758
    %v761 = vsel %vm80, %v759, 0.0
    %762 = vadd.xlane.f32.xlu0 %v761
    %v763 = vpop.xlane.xlu0 %762
    %v764 = vsel %vm80, %v760, 0.0
    %765 = vadd.xlane.f32.xlu0 %v764
    %v766 = vpop.xlane.xlu0 %765
    %v767 = vrcp.pop 32.0
    %v768 = vmul.f32 %v763, %v767
    %v769 = vmul.f32 %v766, %v767
    %v770 = vsub.f32 %v759, %v768
    %v771 = vsub.f32 %v760, %v769
    %v772 = vmul.f32 %v770, %v770
    %v773 = vmul.f32 %v771, %v771
    %v774 = vsel %vm80, %v772, 0.0
    %775 = vadd.xlane.f32.xlu0 %v774
    %v776 = vpop.xlane.xlu0 %775
    %v777 = vsel %vm80, %v773, 0.0
    %778 = vadd.xlane.f32.xlu0 %v777
    %v779 = vpop.xlane.xlu0 %778
    %v780 = vmul.f32 %v776, %v767
    %v781 = vmul.f32 %v779, %v767
    %v782 = vadd.f32 %v780, 1e-05
    %v783 = vadd.f32 %v781, 1e-05
    %v784 = vrsqrt.pop %v782
    %v785 = vrsqrt.pop %v783
    %v786 = vmul.f32 %v770, %v784
    %v787 = vmul.f32 %v771, %v785
    %v788 = vlaneseq
    %v789 = vshrl.u32 %v788, 7
    %v790 = vsub.s32 0, %v789
    %v791 = vrot.slane %v47, %v790
    %v792 = vmul.f32 %v786, %v791
    %v793 = vmul.f32 %v787, %v791
    %v794 = vlaneseq
    %v795 = vshrl.u32 %v794, 7
    %v796 = vsub.s32 1, %v795
    %v797 = vrot.slane %v47, %v796
    %v798 = vadd.f32 %v792, %v797
    %v799 = vadd.f32 %v793, %v797
    %v801 = vsel %vm80, %v798, 0
    %v804 = vsel %vm80, %v799, 0
    %806 = vmatprep.subr.mxu0 0.0
    %807 = vmatpush1.msra.mxu0 %v58
    %808 = vmatprep.subr.mxu0 0.0
    %809 = vmatpush1.msra.mxu0 %v59
    %810 = vmatprep.subr.mxu0 0.0
    %811 = vmatpush1.msra.mxu0 %v60
    %812 = vmatprep.subr.mxu0 0.0
    %813 = vmatpush1.msra.mxu0 %v61
    %814 = vmatprep.subr.mxu0 0.0
    %815 = vmatpush1.msra.mxu0 0.0
    %816 = vmatprep.subr.mxu0 0.0
    %817 = vmatpush1.msra.mxu0 0.0
    %818 = vmatprep.subr.mxu0 0.0
    %819 = vmatpush1.msra.mxu0 0.0
    %820 = vmatprep.subr.mxu0 0.0
    %821 = vmatpush1.msra.mxu0 0.0
    %822 = vmatprep.subr.mxu0 0.0
    %823 = vmatpush1.msra.mxu0 0.0
    %824 = vmatprep.subr.mxu0 0.0
    %825 = vmatpush1.msra.mxu0 0.0
    %826 = vmatprep.subr.mxu0 0.0
    %827 = vmatpush1.msra.mxu0 0.0
    %828 = vmatprep.subr.mxu0 0.0
    %829 = vmatpush1.msra.mxu0 0.0
    %830 = vmatprep.subr.mxu0 0.0
    %831 = vmatpush1.msra.mxu0 0.0
    %832 = vmatprep.subr.mxu0 0.0
    %833 = vmatpush1.msra.mxu0 0.0
    %834 = vmatprep.subr.mxu0 0.0
    %835 = vmatpush1.msra.mxu0 0.0
    %836 = vmatprep.subr.mxu0 0.0
    %837 = vmatpush1.msra.mxu0 0.0
    %838 = vmatprep.subr.mxu0 0.0
    %839 = vmatpush1.msra.mxu0 0.0
    %840 = vmatprep.subr.mxu0 0.0
    %841 = vmatpush1.msra.mxu0 0.0
    %842 = vmatprep.subr.mxu0 0.0
    %843 = vmatpush1.msra.mxu0 0.0
    %844 = vmatprep.subr.mxu0 0.0
    %845 = vmatpush1.msra.mxu0 0.0
    %846 = vmatprep.subr.mxu0 0.0
    %847 = vmatpush1.msra.mxu0 0.0
    %848 = vmatprep.subr.mxu0 0.0
    %849 = vmatpush1.msra.mxu0 0.0
    %850 = vmatprep.subr.mxu0 0.0
    %851 = vmatpush1.msra.mxu0 0.0
    %852 = vmatprep.subr.mxu0 0.0
    %853 = vmatpush1.msra.mxu0 0.0
    %854 = vmatprep.subr.mxu0 0.0
    %855 = vmatpush1.msra.mxu0 0.0
    %856 = vmatprep.subr.mxu0 0.0
    %857 = vmatpush1.msra.mxu0 0.0
    %858 = vmatprep.subr.mxu0 0.0
    %859 = vmatpush1.msra.mxu0 0.0
    %860 = vmatprep.subr.mxu0 0.0
    %861 = vmatpush1.msra.mxu0 0.0
    %862 = vmatprep.subr.mxu0 0.0
    %863 = vmatpush1.msra.mxu0 0.0
    %864 = vmatprep.subr.mxu0 0.0
    %865 = vmatpush1.msra.mxu0 0.0
    %866 = vmatprep.subr.mxu0 0.0
    %867 = vmatpush1.msra.mxu0 0.0
    %868 = vmatprep.subr.mxu0 0.0
    %869 = vmatpush1.msra.mxu0 0.0
    %870 = vmatprep.mubr.f32.mxu0 0.0
    %871 = vmatmul.mubr.f32.gmra.mrb[0].mxu0 %v801
    %v872 = vpop.f32.mrb[0].mxu0
    %v873 = vadd.f32 0.0, %v872
    %v874 = vpop.f32.mrb[0].mxu0
    %875 = vmatprep.mubr.f32.mxu0 0.0
    %876 = vmatmul.mubr.f32.gmra.mrb[0].mxu0 %v804
    %v877 = vpop.f32.mrb[0].mxu0
    %v878 = vadd.f32 0.0, %v877
    %v879 = vpop.f32.mrb[0].mxu0
    %880 = vdwg.mxu0
    %v882 = vsel %vm80, %v43, 0
    %v885 = vsel %vm80, %v44, 0
    %v888 = vsel %vm80, %v45, 0
    %v891 = vsel %vm80, %v46, 0
    %893 = vmatprep.subr.mxu0 0.0
    %894 = vmatpush1.msra.mxu0 %v63
    %895 = vmatprep.subr.mxu0 0.0
    %896 = vmatpush1.msra.mxu0 %v64
    %897 = vmatprep.subr.mxu0 0.0
    %898 = vmatpush1.msra.mxu0 %v65
    %899 = vmatprep.subr.mxu0 0.0
    %900 = vmatpush1.msra.mxu0 %v66
    %901 = vmatprep.subr.mxu0 0.0
    %902 = vmatpush1.msra.mxu0 0.0
    %903 = vmatprep.subr.mxu0 0.0
    %904 = vmatpush1.msra.mxu0 0.0
    %905 = vmatprep.subr.mxu0 0.0
    %906 = vmatpush1.msra.mxu0 0.0
    %907 = vmatprep.subr.mxu0 0.0
    %908 = vmatpush1.msra.mxu0 0.0
    %909 = vmatprep.subr.mxu0 0.0
    %910 = vmatpush1.msra.mxu0 0.0
    %911 = vmatprep.subr.mxu0 0.0
    %912 = vmatpush1.msra.mxu0 0.0
    %913 = vmatprep.subr.mxu0 0.0
    %914 = vmatpush1.msra.mxu0 0.0
    %915 = vmatprep.subr.mxu0 0.0
    %916 = vmatpush1.msra.mxu0 0.0
    %917 = vmatprep.subr.mxu0 0.0
    %918 = vmatpush1.msra.mxu0 0.0
    %919 = vmatprep.subr.mxu0 0.0
    %920 = vmatpush1.msra.mxu0 0.0
    %921 = vmatprep.subr.mxu0 0.0
    %922 = vmatpush1.msra.mxu0 0.0
    %923 = vmatprep.subr.mxu0 0.0
    %924 = vmatpush1.msra.mxu0 0.0
    %925 = vmatprep.subr.mxu0 0.0
    %926 = vmatpush1.msra.mxu0 0.0
    %927 = vmatprep.subr.mxu0 0.0
    %928 = vmatpush1.msra.mxu0 0.0
    %929 = vmatprep.subr.mxu0 0.0
    %930 = vmatpush1.msra.mxu0 0.0
    %931 = vmatprep.subr.mxu0 0.0
    %932 = vmatpush1.msra.mxu0 0.0
    %933 = vmatprep.subr.mxu0 0.0
    %934 = vmatpush1.msra.mxu0 0.0
    %935 = vmatprep.subr.mxu0 0.0
    %936 = vmatpush1.msra.mxu0 0.0
    %937 = vmatprep.subr.mxu0 0.0
    %938 = vmatpush1.msra.mxu0 0.0
    %939 = vmatprep.subr.mxu0 0.0
    %940 = vmatpush1.msra.mxu0 0.0
    %941 = vmatprep.subr.mxu0 0.0
    %942 = vmatpush1.msra.mxu0 0.0
    %943 = vmatprep.subr.mxu0 0.0
    %944 = vmatpush1.msra.mxu0 0.0
    %945 = vmatprep.subr.mxu0 0.0
    %946 = vmatpush1.msra.mxu0 0.0
    %947 = vmatprep.subr.mxu0 0.0
    %948 = vmatpush1.msra.mxu0 0.0
    %949 = vmatprep.subr.mxu0 0.0
    %950 = vmatpush1.msra.mxu0 0.0
    %951 = vmatprep.subr.mxu0 0.0
    %952 = vmatpush1.msra.mxu0 0.0
    %953 = vmatprep.subr.mxu0 0.0
    %954 = vmatpush1.msra.mxu0 0.0
    %955 = vmatprep.subr.mxu0 0.0
    %956 = vmatpush1.msra.mxu0 0.0
    %957 = vmatprep.mubr.f32.mxu0 0.0
    %958 = vmatmul.mubr.f32.gmra.mrb[0].mxu0 %v882
    %v959 = vpop.f32.mrb[0].mxu0
    %v960 = vadd.f32 0.0, %v959
    %v961 = vpop.f32.mrb[0].mxu0
    %962 = vmatprep.mubr.f32.mxu0 0.0
    %963 = vmatmul.mubr.f32.gmra.mrb[0].mxu0 %v885
    %v964 = vpop.f32.mrb[0].mxu0
    %v965 = vadd.f32 0.0, %v964
    %v966 = vpop.f32.mrb[0].mxu0
    %967 = vmatprep.mubr.f32.mxu0 0.0
    %968 = vmatmul.mubr.f32.gmra.mrb[0].mxu0 %v888
    %v969 = vpop.f32.mrb[0].mxu0
    %v970 = vadd.f32 0.0, %v969
    %v971 = vpop.f32.mrb[0].mxu0
    %972 = vmatprep.mubr.f32.mxu0 0.0
    %973 = vmatmul.mubr.f32.gmra.mrb[0].mxu0 %v891
    %v974 = vpop.f32.mrb[0].mxu0
    %v975 = vadd.f32 0.0, %v974
    %v976 = vpop.f32.mrb[0].mxu0
    %977 = vdwg.mxu0
    %v978 = vld [vmem:[%s3] sm:$0xff]
    %v979 = vld [vmem:[%s3 + $0x8] sm:$0xff]
    %v980 = vld [vmem:[%s3 + $0x10] sm:$0xff]
    %v981 = vld [vmem:[%s3 + $0x18] sm:$0xff]
    %983 = vrot.lane.b32.xlu0 %v873, 96
    %v984 = vpop.permute.xlu0 %983
    %985 = vrot.lane.b32.xlu0 %v873, 64
    %v986 = vpop.permute.xlu0 %985
    %987 = vrot.lane.b32.xlu0 %v873, 32
    %v988 = vpop.permute.xlu0 %987
    %v989 = vsel %vm80, %v873, 0
    %v991 = vsel %vm80, %v984, 0
    %v993 = vsel %vm80, %v986, 0
    %v995 = vsel %vm80, %v988, 0
    %997 = vmatprep.subr.mxu0 0.0
    %998 = vmatpush1.xpose.msra.mxu0 %v882
    %999 = vmatprep.subr.mxu0 0.0
    %1000 = vmatpush1.xpose.msra.mxu0 %v885
    %1001 = vmatprep.subr.mxu0 0.0
    %1002 = vmatpush1.xpose.msra.mxu0 0.0
    %1003 = vmatprep.subr.mxu0 0.0
    %1004 = vmatpush1.xpose.msra.mxu0 0.0
    %1005 = vmatprep.subr.mxu0 0.0
    %1006 = vmatpush1.xpose.msra.mxu0 0.0
    %1007 = vmatprep.subr.mxu0 0.0
    %1008 = vmatpush1.xpose.msra.mxu0 0.0
    %1009 = vmatprep.subr.mxu0 0.0
    %1010 = vmatpush1.xpose.msra.mxu0 0.0
    %1011 = vmatprep.subr.mxu0 0.0
    %1012 = vmatpush1.xpose.msra.mxu0 0.0
    %1013 = vmatprep.subr.mxu0 0.0
    %1014 = vmatpush1.xpose.msra.mxu0 0.0
    %1015 = vmatprep.subr.mxu0 0.0
    %1016 = vmatpush1.xpose.msra.mxu0 0.0
    %1017 = vmatprep.subr.mxu0 0.0
    %1018 = vmatpush1.xpose.msra.mxu0 0.0
    %1019 = vmatprep.subr.mxu0 0.0
    %1020 = vmatpush1.xpose.msra.mxu0 0.0
    %1021 = vmatprep.subr.mxu0 0.0
    %1022 = vmatpush1.xpose.msra.mxu0 0.0
    %1023 = vmatprep.subr.mxu0 0.0
    %1024 = vmatpush1.xpose.msra.mxu0 0.0
    %1025 = vmatprep.subr.mxu0 0.0
    %1026 = vmatpush1.xpose.msra.mxu0 0.0
    %1027 = vmatprep.subr.mxu0 0.0
    %1028 = vmatpush1.xpose.msra.mxu0 0.0
    %1029 = vmatprep.subr.mxu0 0.0
    %1030 = vmatpush1.xpose.msra.mxu0 0.0
    %1031 = vmatprep.subr.mxu0 0.0
    %1032 = vmatpush1.xpose.msra.mxu0 0.0
    %1033 = vmatprep.subr.mxu0 0.0
    %1034 = vmatpush1.xpose.msra.mxu0 0.0
    %1035 = vmatprep.subr.mxu0 0.0
    %1036 = vmatpush1.xpose.msra.mxu0 0.0
    %1037 = vmatprep.subr.mxu0 0.0
    %1038 = vmatpush1.xpose.msra.mxu0 0.0
    %1039 = vmatprep.subr.mxu0 0.0
    %1040 = vmatpush1.xpose.msra.mxu0 0.0
    %1041 = vmatprep.subr.mxu0 0.0
    %1042 = vmatpush1.xpose.msra.mxu0 0.0
    %1043 = vmatprep.subr.mxu0 0.0
    %1044 = vmatpush1.xpose.msra.mxu0 0.0
    %1045 = vmatprep.subr.mxu0 0.0
    %1046 = vmatpush1.xpose.msra.mxu0 0.0
    %1047 = vmatprep.subr.mxu0 0.0
    %1048 = vmatpush1.xpose.msra.mxu0 0.0
    %1049 = vmatprep.subr.mxu0 0.0
    %1050 = vmatpush1.xpose.msra.mxu0 0.0
    %1051 = vmatprep.subr.mxu0 0.0
    %1052 = vmatpush1.xpose.msra.mxu0 0.0
    %1053 = vmatprep.subr.mxu0 0.0
    %1054 = vmatpush1.xpose.msra.mxu0 0.0
    %1055 = vmatprep.subr.mxu0 0.0
    %1056 = vmatpush1.xpose.msra.mxu0 0.0
    %1057 = vmatprep.subr.mxu0 0.0
    %1058 = vmatpush1.xpose.msra.mxu0 0.0
    %1059 = vmatprep.subr.mxu0 0.0
    %1060 = vmatpush1.xpose.msra.mxu0 0.0
    %1061 = vmatprep.mubr.f32.mxu0 0.0
    %1062 = vmatmul.mubr.f32.gmra.mrb[0].mxu0 %v989
    %v1063 = vpop.f32.mrb[0].mxu0
    %v1064 = vadd.f32 %v978, %v1063
    %v1065 = vpop.f32.mrb[0].mxu0
    %1066 = vmatprep.mubr.f32.mxu0 0.0
    %1067 = vmatmul.mubr.f32.gmra.mrb[0].mxu0 %v991
    %v1068 = vpop.f32.mrb[0].mxu0
    %v1069 = vadd.f32 %v979, %v1068
    %v1070 = vpop.f32.mrb[0].mxu0
    %1071 = vmatprep.mubr.f32.mxu0 0.0
    %1072 = vmatmul.mubr.f32.gmra.mrb[0].mxu0 %v993
    %v1073 = vpop.f32.mrb[0].mxu0
    %v1074 = vadd.f32 %v980, %v1073
    %v1075 = vpop.f32.mrb[0].mxu0
    %1076 = vmatprep.mubr.f32.mxu0 0.0
    %1077 = vmatmul.mubr.f32.gmra.mrb[0].mxu0 %v995
    %v1078 = vpop.f32.mrb[0].mxu0
    %v1079 = vadd.f32 %v981, %v1078
    %v1080 = vpop.f32.mrb[0].mxu0
    %1081 = vdwg.mxu0
    %vm1082 = vcmask 130048
    %v1083 = vsel %vm1082, %v1064, -inf
    %1084 = vmax.xlane.f32.xlu0 %v1083
    %v1085 = vpop.xlane.xlu0 %1084
    %v1086 = vsel %vm1082, %v1069, -inf
    %1087 = vmax.xlane.f32.xlu0 %v1086
    %v1088 = vpop.xlane.xlu0 %1087
    %v1089 = vsel %vm1082, %v1074, -inf
    %1090 = vmax.xlane.f32.xlu0 %v1089
    %v1091 = vpop.xlane.xlu0 %1090
    %v1092 = vsel %vm1082, %v1079, -inf
    %1093 = vmax.xlane.f32.xlu0 %v1092
    %v1094 = vpop.xlane.xlu0 %1093
    %v1095 = vsub.f32 %v1064, %v1085
    %v1096 = vsub.f32 %v1069, %v1088
    %v1097 = vsub.f32 %v1074, %v1091
    %v1098 = vsub.f32 %v1079, %v1094
    %v1099 = vmul.f32 %v1095, 1.442695
    %v1100 = vpow.pop %v1099
    %v1101 = vmul.f32 %v1096, 1.442695
    %v1102 = vpow.pop %v1101
    %v1103 = vmul.f32 %v1097, 1.442695
    %v1104 = vpow.pop %v1103
    %v1105 = vmul.f32 %v1098, 1.442695
    %v1106 = vpow.pop %v1105
    %v1107 = vsel %vm1082, %v1100, 0.0
    %1108 = vadd.xlane.f32.xlu0 %v1107
    %v1109 = vpop.xlane.xlu0 %1108
    %v1110 = vsel %vm1082, %v1102, 0.0
    %1111 = vadd.xlane.f32.xlu0 %v1110
    %v1112 = vpop.xlane.xlu0 %1111
    %v1113 = vsel %vm1082, %v1104, 0.0
    %1114 = vadd.xlane.f32.xlu0 %v1113
    %v1115 = vpop.xlane.xlu0 %1114
    %v1116 = vsel %vm1082, %v1106, 0.0
    %1117 = vadd.xlane.f32.xlu0 %v1116
    %v1118 = vpop.xlane.xlu0 %1117
    %v1119 = vrcp.pop %v1109
    %v1120 = vrcp.pop %v1112
    %v1121 = vrcp.pop %v1115
    %v1122 = vrcp.pop %v1118
    %v1123 = vmul.f32 %v1100, %v1119
    %v1124 = vmul.f32 %v1102, %v1120
    %v1125 = vmul.f32 %v1104, %v1121
    %v1126 = vmul.f32 %v1106, %v1122
    %v1128 = vsel %vm1082, %v1123, 0
    %v1131 = vsel %vm1082, %v1124, 0
    %v1134 = vsel %vm1082, %v1125, 0
    %v1137 = vsel %vm1082, %v1126, 0
    %1139 = vmatprep.subr.mxu0 0.0
    %1140 = vmatpush1.msra.mxu0 %v960
    %1141 = vmatprep.subr.mxu0 0.0
    %1142 = vmatpush1.msra.mxu0 %v965
    %1143 = vmatprep.subr.mxu0 0.0
    %1144 = vmatpush1.msra.mxu0 0.0
    %1145 = vmatprep.subr.mxu0 0.0
    %1146 = vmatpush1.msra.mxu0 0.0
    %1147 = vmatprep.subr.mxu0 0.0
    %1148 = vmatpush1.msra.mxu0 0.0
    %1149 = vmatprep.subr.mxu0 0.0
    %1150 = vmatpush1.msra.mxu0 0.0
    %1151 = vmatprep.subr.mxu0 0.0
    %1152 = vmatpush1.msra.mxu0 0.0
    %1153 = vmatprep.subr.mxu0 0.0
    %1154 = vmatpush1.msra.mxu0 0.0
    %1155 = vmatprep.subr.mxu0 0.0
    %1156 = vmatpush1.msra.mxu0 0.0
    %1157 = vmatprep.subr.mxu0 0.0
    %1158 = vmatpush1.msra.mxu0 0.0
    %1159 = vmatprep.subr.mxu0 0.0
    %1160 = vmatpush1.msra.mxu0 0.0
    %1161 = vmatprep.subr.mxu0 0.0
    %1162 = vmatpush1.msra.mxu0 0.0
    %1163 = vmatprep.subr.mxu0 0.0
    %1164 = vmatpush1.msra.mxu0 0.0
    %1165 = vmatprep.subr.mxu0 0.0
    %1166 = vmatpush1.msra.mxu0 0.0
    %1167 = vmatprep.subr.mxu0 0.0
    %1168 = vmatpush1.msra.mxu0 0.0
    %1169 = vmatprep.subr.mxu0 0.0
    %1170 = vmatpush1.msra.mxu0 0.0
    %1171 = vmatprep.subr.mxu0 0.0
    %1172 = vmatpush1.msra.mxu0 0.0
    %1173 = vmatprep.subr.mxu0 0.0
    %1174 = vmatpush1.msra.mxu0 0.0
    %1175 = vmatprep.subr.mxu0 0.0
    %1176 = vmatpush1.msra.mxu0 0.0
    %1177 = vmatprep.subr.mxu0 0.0
    %1178 = vmatpush1.msra.mxu0 0.0
    %1179 = vmatprep.subr.mxu0 0.0
    %1180 = vmatpush1.msra.mxu0 0.0
    %1181 = vmatprep.subr.mxu0 0.0
    %1182 = vmatpush1.msra.mxu0 0.0
    %1183 = vmatprep.subr.mxu0 0.0
    %1184 = vmatpush1.msra.mxu0 0.0
    %1185 = vmatprep.subr.mxu0 0.0
    %1186 = vmatpush1.msra.mxu0 0.0
    %1187 = vmatprep.subr.mxu0 0.0
    %1188 = vmatpush1.msra.mxu0 0.0
    %1189 = vmatprep.subr.mxu0 0.0
    %1190 = vmatpush1.msra.mxu0 0.0
    %1191 = vmatprep.subr.mxu0 0.0
    %1192 = vmatpush1.msra.mxu0 0.0
    %1193 = vmatprep.subr.mxu0 0.0
    %1194 = vmatpush1.msra.mxu0 0.0
    %1195 = vmatprep.subr.mxu0 0.0
    %1196 = vmatpush1.msra.mxu0 0.0
    %1197 = vmatprep.subr.mxu0 0.0
    %1198 = vmatpush1.msra.mxu0 0.0
    %1199 = vmatprep.subr.mxu0 0.0
    %1200 = vmatpush1.msra.mxu0 0.0
    %1201 = vmatprep.subr.mxu0 0.0
    %1202 = vmatpush1.msra.mxu0 0.0
    %1203 = vmatprep.mubr.f32.mxu0 0.0
    %1204 = vmatmul.mubr.f32.gmra.mrb[0].mxu0 %v1128
    %v1205 = vpop.f32.mrb[0].mxu0
    %v1206 = vadd.f32 0.0, %v1205
    %v1207 = vpop.f32.mrb[0].mxu0
    %1208 = vmatprep.mubr.f32.mxu0 0.0
    %1209 = vmatmul.mubr.f32.gmra.mrb[0].mxu0 %v1131
    %v1210 = vpop.f32.mrb[0].mxu0
    %v1211 = vadd.f32 0.0, %v1210
    %v1212 = vpop.f32.mrb[0].mxu0
    %1213 = vmatprep.mubr.f32.mxu0 0.0
    %1214 = vmatmul.mubr.f32.gmra.mrb[0].mxu0 %v1134
    %v1215 = vpop.f32.mrb[0].mxu0
    %v1216 = vadd.f32 0.0, %v1215
    %v1217 = vpop.f32.mrb[0].mxu0
    %1218 = vmatprep.mubr.f32.mxu0 0.0
    %1219 = vmatmul.mubr.f32.gmra.mrb[0].mxu0 %v1137
    %v1220 = vpop.f32.mrb[0].mxu0
    %v1221 = vadd.f32 0.0, %v1220
    %v1222 = vpop.f32.mrb[0].mxu0
    %1223 = vdwg.mxu0
    %1225 = vrot.lane.b32.xlu0 %v1211, 96
    %v1226 = vpop.permute.xlu0 %1225
    %v1228 = vadd.f32 %v1206, %v1226
    %1230 = vrot.lane.b32.xlu0 %v1216, 64
    %v1231 = vpop.permute.xlu0 %1230
    %v1233 = vadd.f32 %v1228, %v1231
    %1235 = vrot.lane.b32.xlu0 %v1221, 32
    %v1236 = vpop.permute.xlu0 %1235
    %v1238 = vadd.f32 %v1233, %v1236
    %s1239 = scalar_lea.vmem %s3, 32
    %v1240 = vld [vmem:[%s1239] sm:$0xff]
    %v1241 = vld [vmem:[%s1239 + $0x8] sm:$0xff]
    %v1242 = vld [vmem:[%s1239 + $0x10] sm:$0xff]
    %v1243 = vld [vmem:[%s1239 + $0x18] sm:$0xff]
    %1245 = vrot.lane.b32.xlu0 %v878, 96
    %v1246 = vpop.permute.xlu0 %1245
    %1247 = vrot.lane.b32.xlu0 %v878, 64
    %v1248 = vpop.permute.xlu0 %1247
    %1249 = vrot.lane.b32.xlu0 %v878, 32
    %v1250 = vpop.permute.xlu0 %1249
    %v1251 = vsel %vm80, %v878, 0
    %v1253 = vsel %vm80, %v1246, 0
    %v1255 = vsel %vm80, %v1248, 0
    %v1257 = vsel %vm80, %v1250, 0
    %1259 = vmatprep.subr.mxu0 0.0
    %1260 = vmatpush1.xpose.msra.mxu0 %v888
    %1261 = vmatprep.subr.mxu0 0.0
    %1262 = vmatpush1.xpose.msra.mxu0 %v891
    %1263 = vmatprep.subr.mxu0 0.0
    %1264 = vmatpush1.xpose.msra.mxu0 0.0
    %1265 = vmatprep.subr.mxu0 0.0
    %1266 = vmatpush1.xpose.msra.mxu0 0.0
    %1267 = vmatprep.subr.mxu0 0.0
    %1268 = vmatpush1.xpose.msra.mxu0 0.0
    %1269 = vmatprep.subr.mxu0 0.0
    %1270 = vmatpush1.xpose.msra.mxu0 0.0
    %1271 = vmatprep.subr.mxu0 0.0
    %1272 = vmatpush1.xpose.msra.mxu0 0.0
    %1273 = vmatprep.subr.mxu0 0.0
    %1274 = vmatpush1.xpose.msra.mxu0 0.0
    %1275 = vmatprep.subr.mxu0 0.0
    %1276 = vmatpush1.xpose.msra.mxu0 0.0
    %1277 = vmatprep.subr.mxu0 0.0
    %1278 = vmatpush1.xpose.msra.mxu0 0.0
    %1279 = vmatprep.subr.mxu0 0.0
    %1280 = vmatpush1.xpose.msra.mxu0 0.0
    %1281 = vmatprep.subr.mxu0 0.0
    %1282 = vmatpush1.xpose.msra.mxu0 0.0
    %1283 = vmatprep.subr.mxu0 0.0
    %1284 = vmatpush1.xpose.msra.mxu0 0.0
    %1285 = vmatprep.subr.mxu0 0.0
    %1286 = vmatpush1.xpose.msra.mxu0 0.0
    %1287 = vmatprep.subr.mxu0 0.0
    %1288 = vmatpush1.xpose.msra.mxu0 0.0
    %1289 = vmatprep.subr.mxu0 0.0
    %1290 = vmatpush1.xpose.msra.mxu0 0.0
    %1291 = vmatprep.subr.mxu0 0.0
    %1292 = vmatpush1.xpose.msra.mxu0 0.0
    %1293 = vmatprep.subr.mxu0 0.0
    %1294 = vmatpush1.xpose.msra.mxu0 0.0
    %1295 = vmatprep.subr.mxu0 0.0
    %1296 = vmatpush1.xpose.msra.mxu0 0.0
    %1297 = vmatprep.subr.mxu0 0.0
    %1298 = vmatpush1.xpose.msra.mxu0 0.0
    %1299 = vmatprep.subr.mxu0 0.0
    %1300 = vmatpush1.xpose.msra.mxu0 0.0
    %1301 = vmatprep.subr.mxu0 0.0
    %1302 = vmatpush1.xpose.msra.mxu0 0.0
    %1303 = vmatprep.subr.mxu0 0.0
    %1304 = vmatpush1.xpose.msra.mxu0 0.0
    %1305 = vmatprep.subr.mxu0 0.0
    %1306 = vmatpush1.xpose.msra.mxu0 0.0
    %1307 = vmatprep.subr.mxu0 0.0
    %1308 = vmatpush1.xpose.msra.mxu0 0.0
    %1309 = vmatprep.subr.mxu0 0.0
    %1310 = vmatpush1.xpose.msra.mxu0 0.0
    %1311 = vmatprep.subr.mxu0 0.0
    %1312 = vmatpush1.xpose.msra.mxu0 0.0
    %1313 = vmatprep.subr.mxu0 0.0
    %1314 = vmatpush1.xpose.msra.mxu0 0.0
    %1315 = vmatprep.subr.mxu0 0.0
    %1316 = vmatpush1.xpose.msra.mxu0 0.0
    %1317 = vmatprep.subr.mxu0 0.0
    %1318 = vmatpush1.xpose.msra.mxu0 0.0
    %1319 = vmatprep.subr.mxu0 0.0
    %1320 = vmatpush1.xpose.msra.mxu0 0.0
    %1321 = vmatprep.subr.mxu0 0.0
    %1322 = vmatpush1.xpose.msra.mxu0 0.0
    %1323 = vmatprep.mubr.f32.mxu0 0.0
    %1324 = vmatmul.mubr.f32.gmra.mrb[0].mxu0 %v1251
    %v1325 = vpop.f32.mrb[0].mxu0
    %v1326 = vadd.f32 %v1240, %v1325
    %v1327 = vpop.f32.mrb[0].mxu0
    %1328 = vmatprep.mubr.f32.mxu0 0.0
    %1329 = vmatmul.mubr.f32.gmra.mrb[0].mxu0 %v1253
    %v1330 = vpop.f32.mrb[0].mxu0
    %v1331 = vadd.f32 %v1241, %v1330
    %v1332 = vpop.f32.mrb[0].mxu0
    %1333 = vmatprep.mubr.f32.mxu0 0.0
    %1334 = vmatmul.mubr.f32.gmra.mrb[0].mxu0 %v1255
    %v1335 = vpop.f32.mrb[0].mxu0
    %v1336 = vadd.f32 %v1242, %v1335
    %v1337 = vpop.f32.mrb[0].mxu0
    %1338 = vmatprep.mubr.f32.mxu0 0.0
    %1339 = vmatmul.mubr.f32.gmra.mrb[0].mxu0 %v1257
    %v1340 = vpop.f32.mrb[0].mxu0
    %v1341 = vadd.f32 %v1243, %v1340
    %v1342 = vpop.f32.mrb[0].mxu0
    %1343 = vdwg.mxu0
    %v1344 = vsel %vm1082, %v1326, -inf
    %1345 = vmax.xlane.f32.xlu0 %v1344
    %v1346 = vpop.xlane.xlu0 %1345
    %v1347 = vsel %vm1082, %v1331, -inf
    %1348 = vmax.xlane.f32.xlu0 %v1347
    %v1349 = vpop.xlane.xlu0 %1348
    %v1350 = vsel %vm1082, %v1336, -inf
    %1351 = vmax.xlane.f32.xlu0 %v1350
    %v1352 = vpop.xlane.xlu0 %1351
    %v1353 = vsel %vm1082, %v1341, -inf
    %1354 = vmax.xlane.f32.xlu0 %v1353
    %v1355 = vpop.xlane.xlu0 %1354
    %v1356 = vsub.f32 %v1326, %v1346
    %v1357 = vsub.f32 %v1331, %v1349
    %v1358 = vsub.f32 %v1336, %v1352
    %v1359 = vsub.f32 %v1341, %v1355
    %v1360 = vmul.f32 %v1356, 1.442695
    %v1361 = vpow.pop %v1360
    %v1362 = vmul.f32 %v1357, 1.442695
    %v1363 = vpow.pop %v1362
    %v1364 = vmul.f32 %v1358, 1.442695
    %v1365 = vpow.pop %v1364
    %v1366 = vmul.f32 %v1359, 1.442695
    %v1367 = vpow.pop %v1366
    %v1368 = vsel %vm1082, %v1361, 0.0
    %1369 = vadd.xlane.f32.xlu0 %v1368
    %v1370 = vpop.xlane.xlu0 %1369
    %v1371 = vsel %vm1082, %v1363, 0.0
    %1372 = vadd.xlane.f32.xlu0 %v1371
    %v1373 = vpop.xlane.xlu0 %1372
    %v1374 = vsel %vm1082, %v1365, 0.0
    %1375 = vadd.xlane.f32.xlu0 %v1374
    %v1376 = vpop.xlane.xlu0 %1375
    %v1377 = vsel %vm1082, %v1367, 0.0
    %1378 = vadd.xlane.f32.xlu0 %v1377
    %v1379 = vpop.xlane.xlu0 %1378
    %v1380 = vrcp.pop %v1370
    %v1381 = vrcp.pop %v1373
    %v1382 = vrcp.pop %v1376
    %v1383 = vrcp.pop %v1379
    %v1384 = vmul.f32 %v1361, %v1380
    %v1385 = vmul.f32 %v1363, %v1381
    %v1386 = vmul.f32 %v1365, %v1382
    %v1387 = vmul.f32 %v1367, %v1383
    %v1389 = vsel %vm1082, %v1384, 0
    %v1392 = vsel %vm1082, %v1385, 0
    %v1395 = vsel %vm1082, %v1386, 0
    %v1398 = vsel %vm1082, %v1387, 0
    %1400 = vmatprep.subr.mxu0 0.0
    %1401 = vmatpush1.msra.mxu0 %v970
    %1402 = vmatprep.subr.mxu0 0.0
    %1403 = vmatpush1.msra.mxu0 %v975
    %1404 = vmatprep.subr.mxu0 0.0
    %1405 = vmatpush1.msra.mxu0 0.0
    %1406 = vmatprep.subr.mxu0 0.0
    %1407 = vmatpush1.msra.mxu0 0.0
    %1408 = vmatprep.subr.mxu0 0.0
    %1409 = vmatpush1.msra.mxu0 0.0
    %1410 = vmatprep.subr.mxu0 0.0
    %1411 = vmatpush1.msra.mxu0 0.0
    %1412 = vmatprep.subr.mxu0 0.0
    %1413 = vmatpush1.msra.mxu0 0.0
    %1414 = vmatprep.subr.mxu0 0.0
    %1415 = vmatpush1.msra.mxu0 0.0
    %1416 = vmatprep.subr.mxu0 0.0
    %1417 = vmatpush1.msra.mxu0 0.0
    %1418 = vmatprep.subr.mxu0 0.0
    %1419 = vmatpush1.msra.mxu0 0.0
    %1420 = vmatprep.subr.mxu0 0.0
    %1421 = vmatpush1.msra.mxu0 0.0
    %1422 = vmatprep.subr.mxu0 0.0
    %1423 = vmatpush1.msra.mxu0 0.0
    %1424 = vmatprep.subr.mxu0 0.0
    %1425 = vmatpush1.msra.mxu0 0.0
    %1426 = vmatprep.subr.mxu0 0.0
    %1427 = vmatpush1.msra.mxu0 0.0
    %1428 = vmatprep.subr.mxu0 0.0
    %1429 = vmatpush1.msra.mxu0 0.0
    %1430 = vmatprep.subr.mxu0 0.0
    %1431 = vmatpush1.msra.mxu0 0.0
    %1432 = vmatprep.subr.mxu0 0.0
    %1433 = vmatpush1.msra.mxu0 0.0
    %1434 = vmatprep.subr.mxu0 0.0
    %1435 = vmatpush1.msra.mxu0 0.0
    %1436 = vmatprep.subr.mxu0 0.0
    %1437 = vmatpush1.msra.mxu0 0.0
    %1438 = vmatprep.subr.mxu0 0.0
    %1439 = vmatpush1.msra.mxu0 0.0
    %1440 = vmatprep.subr.mxu0 0.0
    %1441 = vmatpush1.msra.mxu0 0.0
    %1442 = vmatprep.subr.mxu0 0.0
    %1443 = vmatpush1.msra.mxu0 0.0
    %1444 = vmatprep.subr.mxu0 0.0
    %1445 = vmatpush1.msra.mxu0 0.0
    %1446 = vmatprep.subr.mxu0 0.0
    %1447 = vmatpush1.msra.mxu0 0.0
    %1448 = vmatprep.subr.mxu0 0.0
    %1449 = vmatpush1.msra.mxu0 0.0
    %1450 = vmatprep.subr.mxu0 0.0
    %1451 = vmatpush1.msra.mxu0 0.0
    %1452 = vmatprep.subr.mxu0 0.0
    %1453 = vmatpush1.msra.mxu0 0.0
    %1454 = vmatprep.subr.mxu0 0.0
    %1455 = vmatpush1.msra.mxu0 0.0
    %1456 = vmatprep.subr.mxu0 0.0
    %1457 = vmatpush1.msra.mxu0 0.0
    %1458 = vmatprep.subr.mxu0 0.0
    %1459 = vmatpush1.msra.mxu0 0.0
    %1460 = vmatprep.subr.mxu0 0.0
    %1461 = vmatpush1.msra.mxu0 0.0
    %1462 = vmatprep.subr.mxu0 0.0
    %1463 = vmatpush1.msra.mxu0 0.0
    %1464 = vmatprep.mubr.f32.mxu0 0.0
    %1465 = vmatmul.mubr.f32.gmra.mrb[0].mxu0 %v1389
    %v1466 = vpop.f32.mrb[0].mxu0
    %v1467 = vadd.f32 0.0, %v1466
    %v1468 = vpop.f32.mrb[0].mxu0
    %1469 = vmatprep.mubr.f32.mxu0 0.0
    %1470 = vmatmul.mubr.f32.gmra.mrb[0].mxu0 %v1392
    %v1471 = vpop.f32.mrb[0].mxu0
    %v1472 = vadd.f32 0.0, %v1471
    %v1473 = vpop.f32.mrb[0].mxu0
    %1474 = vmatprep.mubr.f32.mxu0 0.0
    %1475 = vmatmul.mubr.f32.gmra.mrb[0].mxu0 %v1395
    %v1476 = vpop.f32.mrb[0].mxu0
    %v1477 = vadd.f32 0.0, %v1476
    %v1478 = vpop.f32.mrb[0].mxu0
    %1479 = vmatprep.mubr.f32.mxu0 0.0
    %1480 = vmatmul.mubr.f32.gmra.mrb[0].mxu0 %v1398
    %v1481 = vpop.f32.mrb[0].mxu0
    %v1482 = vadd.f32 0.0, %v1481
    %v1483 = vpop.f32.mrb[0].mxu0
    %1484 = vdwg.mxu0
    %1486 = vrot.lane.b32.xlu0 %v1472, 96
    %v1487 = vpop.permute.xlu0 %1486
    %v1489 = vadd.f32 %v1467, %v1487
    %1491 = vrot.lane.b32.xlu0 %v1477, 64
    %v1492 = vpop.permute.xlu0 %1491
    %v1494 = vadd.f32 %v1489, %v1492
    %1496 = vrot.lane.b32.xlu0 %v1482, 32
    %v1497 = vpop.permute.xlu0 %1496
    %v1499 = vadd.f32 %v1494, %v1497
    %v1500 = vadd.f32 %v798, %v1238
    %v1501 = vadd.f32 %v799, %v1499
    %v1502 = vsel %vm80, %v1500, 0.0
    %1503 = vadd.xlane.f32.xlu0 %v1502
    %v1504 = vpop.xlane.xlu0 %1503
    %v1505 = vsel %vm80, %v1501, 0.0
    %1506 = vadd.xlane.f32.xlu0 %v1505
    %v1507 = vpop.xlane.xlu0 %1506
    %v1508 = vmul.f32 %v1504, %v767
    %v1509 = vmul.f32 %v1507, %v767
    %v1510 = vsub.f32 %v1500, %v1508
    %v1511 = vsub.f32 %v1501, %v1509
    %v1512 = vmul.f32 %v1510, %v1510
    %v1513 = vmul.f32 %v1511, %v1511
    %v1514 = vsel %vm80, %v1512, 0.0
    %1515 = vadd.xlane.f32.xlu0 %v1514
    %v1516 = vpop.xlane.xlu0 %1515
    %v1517 = vsel %vm80, %v1513, 0.0
    %1518 = vadd.xlane.f32.xlu0 %v1517
    %v1519 = vpop.xlane.xlu0 %1518
    %v1520 = vmul.f32 %v1516, %v767
    %v1521 = vmul.f32 %v1519, %v767
    %v1522 = vadd.f32 %v1520, 1e-05
    %v1523 = vadd.f32 %v1521, 1e-05
    %v1524 = vrsqrt.pop %v1522
    %v1525 = vrsqrt.pop %v1523
    %v1526 = vmul.f32 %v1510, %v1524
    %v1527 = vmul.f32 %v1511, %v1525
    %v1528 = vlaneseq
    %v1529 = vshrl.u32 %v1528, 7
    %v1530 = vsub.s32 2, %v1529
    %v1531 = vrot.slane %v47, %v1530
    %v1532 = vmul.f32 %v1526, %v1531
    %v1533 = vmul.f32 %v1527, %v1531
    %v1534 = vlaneseq
    %v1535 = vshrl.u32 %v1534, 7
    %v1536 = vsub.s32 3, %v1535
    %v1537 = vrot.slane %v47, %v1536
    %v1538 = vadd.f32 %v1532, %v1537
    %v1539 = vadd.f32 %v1533, %v1537
    %v1540 = vlaneseq
    %v1541 = vshrl.u32 %v1540, 7
    %v1542 = vsub.s32 6, %v1541
    %v1543 = vrot.slane %v47, %v1542
    %v1545 = vsel %vm80, %v1538, 0
    %v1548 = vsel %vm80, %v1539, 0
    %1550 = vmatprep.subr.mxu0 0.0
    %1551 = vmatpush1.msra.mxu0 %v67
    %1552 = vmatprep.subr.mxu0 0.0
    %1553 = vmatpush1.msra.mxu0 %v68
    %1554 = vmatprep.subr.mxu0 0.0
    %1555 = vmatpush1.msra.mxu0 %v69
    %1556 = vmatprep.subr.mxu0 0.0
    %1557 = vmatpush1.msra.mxu0 %v70
    %1558 = vmatprep.subr.mxu0 0.0
    %1559 = vmatpush1.msra.mxu0 0.0
    %1560 = vmatprep.subr.mxu0 0.0
    %1561 = vmatpush1.msra.mxu0 0.0
    %1562 = vmatprep.subr.mxu0 0.0
    %1563 = vmatpush1.msra.mxu0 0.0
    %1564 = vmatprep.subr.mxu0 0.0
    %1565 = vmatpush1.msra.mxu0 0.0
    %1566 = vmatprep.subr.mxu0 0.0
    %1567 = vmatpush1.msra.mxu0 0.0
    %1568 = vmatprep.subr.mxu0 0.0
    %1569 = vmatpush1.msra.mxu0 0.0
    %1570 = vmatprep.subr.mxu0 0.0
    %1571 = vmatpush1.msra.mxu0 0.0
    %1572 = vmatprep.subr.mxu0 0.0
    %1573 = vmatpush1.msra.mxu0 0.0
    %1574 = vmatprep.subr.mxu0 0.0
    %1575 = vmatpush1.msra.mxu0 0.0
    %1576 = vmatprep.subr.mxu0 0.0
    %1577 = vmatpush1.msra.mxu0 0.0
    %1578 = vmatprep.subr.mxu0 0.0
    %1579 = vmatpush1.msra.mxu0 0.0
    %1580 = vmatprep.subr.mxu0 0.0
    %1581 = vmatpush1.msra.mxu0 0.0
    %1582 = vmatprep.subr.mxu0 0.0
    %1583 = vmatpush1.msra.mxu0 0.0
    %1584 = vmatprep.subr.mxu0 0.0
    %1585 = vmatpush1.msra.mxu0 0.0
    %1586 = vmatprep.subr.mxu0 0.0
    %1587 = vmatpush1.msra.mxu0 0.0
    %1588 = vmatprep.subr.mxu0 0.0
    %1589 = vmatpush1.msra.mxu0 0.0
    %1590 = vmatprep.subr.mxu0 0.0
    %1591 = vmatpush1.msra.mxu0 0.0
    %1592 = vmatprep.subr.mxu0 0.0
    %1593 = vmatpush1.msra.mxu0 0.0
    %1594 = vmatprep.subr.mxu0 0.0
    %1595 = vmatpush1.msra.mxu0 0.0
    %1596 = vmatprep.subr.mxu0 0.0
    %1597 = vmatpush1.msra.mxu0 0.0
    %1598 = vmatprep.subr.mxu0 0.0
    %1599 = vmatpush1.msra.mxu0 0.0
    %1600 = vmatprep.subr.mxu0 0.0
    %1601 = vmatpush1.msra.mxu0 0.0
    %1602 = vmatprep.subr.mxu0 0.0
    %1603 = vmatpush1.msra.mxu0 0.0
    %1604 = vmatprep.subr.mxu0 0.0
    %1605 = vmatpush1.msra.mxu0 0.0
    %1606 = vmatprep.subr.mxu0 0.0
    %1607 = vmatpush1.msra.mxu0 0.0
    %1608 = vmatprep.subr.mxu0 0.0
    %1609 = vmatpush1.msra.mxu0 0.0
    %1610 = vmatprep.subr.mxu0 0.0
    %1611 = vmatpush1.msra.mxu0 0.0
    %1612 = vmatprep.subr.mxu0 0.0
    %1613 = vmatpush1.msra.mxu0 0.0
    %1614 = vmatprep.mubr.f32.mxu0 0.0
    %1615 = vmatmul.mubr.f32.gmra.mrb[0].mxu0 %v1545
    %v1616 = vpop.f32.mrb[0].mxu0
    %v1617 = vadd.f32 %v1543, %v1616
    %v1618 = vpop.f32.mrb[0].mxu0
    %1619 = vmatprep.mubr.f32.mxu0 0.0
    %1620 = vmatmul.mubr.f32.gmra.mrb[0].mxu0 %v1548
    %v1621 = vpop.f32.mrb[0].mxu0
    %v1622 = vadd.f32 %v1543, %v1621
    %v1623 = vpop.f32.mrb[0].mxu0
    %1624 = vdwg.mxu0
    %v1625 = vmax.f32 %v1617, 0.0
    %v1626 = vmax.f32 %v1622, 0.0
    %v1627 = vlaneseq
    %v1628 = vshrl.u32 %v1627, 7
    %v1629 = vsub.s32 7, %v1628
    %v1630 = vrot.slane %v47, %v1629
    %vm1631 = vcmask 523264
    %v1633 = vsel %vm1631, %v1625, 0
    %v1636 = vsel %vm1631, %v1626, 0
    %1638 = vmatprep.subr.mxu0 0.0
    %1639 = vmatpush1.msra.mxu0 %v72
    %1640 = vmatprep.subr.mxu0 0.0
    %1641 = vmatpush1.msra.mxu0 %v73
    %1642 = vmatprep.subr.mxu0 0.0
    %1643 = vmatpush1.msra.mxu0 %v74
    %1644 = vmatprep.subr.mxu0 0.0
    %1645 = vmatpush1.msra.mxu0 %v75
    %1646 = vmatprep.subr.mxu0 0.0
    %1647 = vmatpush1.msra.mxu0 %v76
    %1648 = vmatprep.subr.mxu0 0.0
    %1649 = vmatpush1.msra.mxu0 %v77
    %1650 = vmatprep.subr.mxu0 0.0
    %1651 = vmatpush1.msra.mxu0 %v78
    %1652 = vmatprep.subr.mxu0 0.0
    %1653 = vmatpush1.msra.mxu0 %v79
    %1654 = vmatprep.subr.mxu0 0.0
    %1655 = vmatpush1.msra.mxu0 0.0
    %1656 = vmatprep.subr.mxu0 0.0
    %1657 = vmatpush1.msra.mxu0 0.0
    %1658 = vmatprep.subr.mxu0 0.0
    %1659 = vmatpush1.msra.mxu0 0.0
    %1660 = vmatprep.subr.mxu0 0.0
    %1661 = vmatpush1.msra.mxu0 0.0
    %1662 = vmatprep.subr.mxu0 0.0
    %1663 = vmatpush1.msra.mxu0 0.0
    %1664 = vmatprep.subr.mxu0 0.0
    %1665 = vmatpush1.msra.mxu0 0.0
    %1666 = vmatprep.subr.mxu0 0.0
    %1667 = vmatpush1.msra.mxu0 0.0
    %1668 = vmatprep.subr.mxu0 0.0
    %1669 = vmatpush1.msra.mxu0 0.0
    %1670 = vmatprep.subr.mxu0 0.0
    %1671 = vmatpush1.msra.mxu0 0.0
    %1672 = vmatprep.subr.mxu0 0.0
    %1673 = vmatpush1.msra.mxu0 0.0
    %1674 = vmatprep.subr.mxu0 0.0
    %1675 = vmatpush1.msra.mxu0 0.0
    %1676 = vmatprep.subr.mxu0 0.0
    %1677 = vmatpush1.msra.mxu0 0.0
    %1678 = vmatprep.subr.mxu0 0.0
    %1679 = vmatpush1.msra.mxu0 0.0
    %1680 = vmatprep.subr.mxu0 0.0
    %1681 = vmatpush1.msra.mxu0 0.0
    %1682 = vmatprep.subr.mxu0 0.0
    %1683 = vmatpush1.msra.mxu0 0.0
    %1684 = vmatprep.subr.mxu0 0.0
    %1685 = vmatpush1.msra.mxu0 0.0
    %1686 = vmatprep.subr.mxu0 0.0
    %1687 = vmatpush1.msra.mxu0 0.0
    %1688 = vmatprep.subr.mxu0 0.0
    %1689 = vmatpush1.msra.mxu0 0.0
    %1690 = vmatprep.subr.mxu0 0.0
    %1691 = vmatpush1.msra.mxu0 0.0
    %1692 = vmatprep.subr.mxu0 0.0
    %1693 = vmatpush1.msra.mxu0 0.0
    %1694 = vmatprep.subr.mxu0 0.0
    %1695 = vmatpush1.msra.mxu0 0.0
    %1696 = vmatprep.subr.mxu0 0.0
    %1697 = vmatpush1.msra.mxu0 0.0
    %1698 = vmatprep.subr.mxu0 0.0
    %1699 = vmatpush1.msra.mxu0 0.0
    %1700 = vmatprep.subr.mxu0 0.0
    %1701 = vmatpush1.msra.mxu0 0.0
    %1702 = vmatprep.mubr.f32.mxu0 0.0
    %1703 = vmatmul.mubr.f32.gmra.mrb[0].mxu0 %v1633
    %v1704 = vpop.f32.mrb[0].mxu0
    %v1705 = vadd.f32 %v1630, %v1704
    %v1706 = vpop.f32.mrb[0].mxu0
    %1707 = vmatprep.mubr.f32.mxu0 0.0
    %1708 = vmatmul.mubr.f32.gmra.mrb[0].mxu0 %v1636
    %v1709 = vpop.f32.mrb[0].mxu0
    %v1710 = vadd.f32 %v1630, %v1709
    %v1711 = vpop.f32.mrb[0].mxu0
    %1712 = vdwg.mxu0
    %v1713 = vadd.f32 %v1538, %v1705
    %v1714 = vadd.f32 %v1539, %v1710
    %v1715 = vsel %vm80, %v1713, 0.0
    %1716 = vadd.xlane.f32.xlu0 %v1715
    %v1717 = vpop.xlane.xlu0 %1716
    %v1718 = vsel %vm80, %v1714, 0.0
    %1719 = vadd.xlane.f32.xlu0 %v1718
    %v1720 = vpop.xlane.xlu0 %1719
    %v1721 = vmul.f32 %v1717, %v767
    %v1722 = vmul.f32 %v1720, %v767
    %v1723 = vsub.f32 %v1713, %v1721
    %v1724 = vsub.f32 %v1714, %v1722
    %v1725 = vmul.f32 %v1723, %v1723
    %v1726 = vmul.f32 %v1724, %v1724
    %v1727 = vsel %vm80, %v1725, 0.0
    %1728 = vadd.xlane.f32.xlu0 %v1727
    %v1729 = vpop.xlane.xlu0 %1728
    %v1730 = vsel %vm80, %v1726, 0.0
    %1731 = vadd.xlane.f32.xlu0 %v1730
    %v1732 = vpop.xlane.xlu0 %1731
    %v1733 = vmul.f32 %v1729, %v767
    %v1734 = vmul.f32 %v1732, %v767
    %v1735 = vadd.f32 %v1733, 1e-05
    %v1736 = vadd.f32 %v1734, 1e-05
    %v1737 = vrsqrt.pop %v1735
    %v1738 = vrsqrt.pop %v1736
    %v1739 = vmul.f32 %v1723, %v1737
    %v1740 = vmul.f32 %v1724, %v1738
    %v1741 = vlaneseq
    %v1742 = vshrl.u32 %v1741, 7
    %v1743 = vsub.s32 4, %v1742
    %v1744 = vrot.slane %v47, %v1743
    %v1745 = vmul.f32 %v1739, %v1744
    %v1746 = vmul.f32 %v1740, %v1744
    %v1747 = vlaneseq
    %v1748 = vshrl.u32 %v1747, 7
    %v1749 = vsub.s32 5, %v1748
    %v1750 = vrot.slane %v47, %v1749
    %v1751 = vadd.f32 %v1745, %v1750
    %v1752 = vadd.f32 %v1746, %v1750
    %1753 = vst.msk [vmem:[#allocation5] sm:$0xff] %vm80, %v1751
    %1754 = vst.msk [vmem:[#allocation5 + $0x8] sm:$0xff] %vm80, %v1752
    // Predicated region
    $region34: #{_run_pallas.1} parent=1 // pred_check
      _
    $region35: #{_run_pallas.1} parent=1 // pred_check_branch
      %1756 = sbr.rel (0) target = $region37
    $region36: #{_run_pallas.1} parent=1 // pred_region
      %s1758 = ssub.s32 256, 256
      %1759 = vsyncadd [#allocation4], %s1758
      %s1760 = sshll.u32 [#allocation5], 4
      %s1761 = int_to_ptr.vmem [resolvable:$true] %s1760
      %1766 = dma.vmem_to_hbm [thread:$0]  %s1761, 256, %s7, [#allocation4], 128, 128, 8
    $region37: #{_run_pallas.1} parent=1 // pred_fallthru
      _
    // Predicated region
    $region38: #{_run_pallas.1} parent=1 // pred_check
      _
    $region39: #{_run_pallas.1} parent=1 // pred_check_branch
      %1768 = sbr.rel (0) target = $region41
    $region40: #{_run_pallas.1} parent=1 // pred_region
      %1769 = dma.done [#allocation4], 256
    $region41: #{_run_pallas.1} parent=1 // pred_fallthru
      _
    %1770 = vsyncpa [#allocation3], 1
    %1771 = vsyncpa [#allocation4], 1

</llo_original>
